<compile_context>
chip_gen: v7x
topology: tpu7x:2x2x1
jax: 0.10.0
libtpu: 0.0.40
codegen_flags: <defaults>
</compile_context>

<pallas_src>
import jax
import jax.numpy as jnp
import numpy as np
from jax.experimental import pallas as pl
from jax.experimental.pallas import tpu as pltpu

# ---------------- configuration (small shapes consistent with the module) ----------------
BATCH = 2
LATENT_SIZE = 32               # config.latent_size
N_POS = 8                      # t_config.n_positions
DL_OUT = 10 * N_POS            # 80  : decode_latent.out_features
GS_OUT = 100 * N_POS           # 800 : grow_sequence.out_features
SEQ = N_POS                    # 8   : tokens after .view(B, -1, 100)
D_MODEL = 128                  # t_config.d_model (lane-dense choice)
FLAT = SEQ * D_MODEL           # 1024
LN_EPS = 1e-9                  # funnel layer_norm_eps


# ---------------------------------- Pallas kernel ----------------------------------
def _decoder_kernel(latent_ref, w_ref, consts_ref, red_ref, bcast_ref, out_ref):
    # latent_ref : (B, LATENT_SIZE)   f32
    # w_ref      : (LATENT_SIZE, FLAT) f32  precomposed decode_latent/grow_sequence/grow_tokens
    # consts_ref : (3, FLAT)          f32  rows: [bias_flat, gamma_tiled, beta_tiled]
    # red_ref    : (FLAT, SEQ)        f32  block-diag ones * (1/D)   (per-token mean)
    # bcast_ref  : (SEQ, FLAT)        f32  block-row ones            (token -> lanes)
    # out_ref    : (B, FLAT)          f32  flat; wrapper does the free (B, SEQ, D) reshape
    x = latent_ref[...]
    consts = consts_ref[...]

    # Fused projection (one MXU dot) + fused per-token bias, all flat on lanes.
    y = jnp.dot(x, w_ref[...], preferred_element_type=jnp.float32)      # (B, FLAT)
    y = y + consts[0:1, :]

    # Per-token LayerNorm stats via MXU (no lanes->sublanes relayout, no XLU reduce):
    red = red_ref[...]
    bc = bcast_ref[...]
    mu_tok = jnp.dot(y, red, preferred_element_type=jnp.float32)        # (B, SEQ)  E[x]
    ex2_tok = jnp.dot(y * y, red, preferred_element_type=jnp.float32)   # (B, SEQ)  E[x^2]
    mu = jnp.dot(mu_tok, bc, preferred_element_type=jnp.float32)        # (B, FLAT)
    ex2 = jnp.dot(ex2_tok, bc, preferred_element_type=jnp.float32)      # (B, FLAT)

    var = ex2 - mu * mu                     # single-pass variance (fine in f32 over D=128)
    inv = jax.lax.rsqrt(var + LN_EPS)       # EUP slot

    # gamma/beta pre-tiled to (1, FLAT); one unmasked 1024-lane store slab.
    out_ref[...] = ((y - mu) * inv * consts[1:2, :] + consts[2:3, :]).astype(out_ref.dtype)


# ------------------------------- wrapper / param folding -------------------------------
def fold_params(p):
    """One-time f32 precomposition of the three Linear layers + LN constants + reduce maps."""
    hp = "highest"
    # decode_latent o grow_sequence
    W_a = jnp.dot(p["W_dl"], p["W_gs"], precision=hp)                    # (L, GS_OUT)
    b_a = jnp.dot(p["b_dl"], p["W_gs"], precision=hp) + p["b_gs"]        # (GS_OUT,)
    # fold grow_tokens through the .view(B, -1, 100) split
    W_full = jnp.einsum(
        "lsc,cd->lsd", W_a.reshape(LATENT_SIZE, SEQ, 100), p["W_gt"], precision=hp
    ).reshape(LATENT_SIZE, FLAT)                                         # (L, FLAT)
    b_full = (
        jnp.dot(b_a.reshape(SEQ, 100), p["W_gt"], precision=hp) + p["b_gt"][None, :]
    ).reshape(1, FLAT)                                                   # (1, FLAT)
    gamma = jnp.tile(p["ln_w"], SEQ).reshape(1, FLAT)
    beta = jnp.tile(p["ln_b"], SEQ).reshape(1, FLAT)
    consts = jnp.concatenate([b_full, gamma, beta], axis=0).astype(jnp.float32)

    # Block-diagonal per-token mean matrix and its 0/1 broadcast transpose.
    tok_of = jnp.arange(FLAT, dtype=jnp.int32) // D_MODEL                # token id per lane
    sel = (tok_of[:, None] == jnp.arange(SEQ, dtype=jnp.int32)[None, :]).astype(jnp.float32)
    return {
        "W": W_full.astype(jnp.float32),          # keep f32: tight parity, no perf cost here
        "consts": consts,
        "red": sel / jnp.float32(D_MODEL),        # (FLAT, SEQ)
        "bcast": sel.T,                           # (SEQ, FLAT)
    }


def latent_decoder(latent, folded):
    """latent: (B, latent_size) f32 -> (B, SEQ, D_MODEL) f32."""
    B = latent.shape[0]
    vmem = pl.BlockSpec(memory_space=pltpu.MemorySpace.VMEM)

    flops = (
        2 * B * LATENT_SIZE * FLAT      # fused projection
        + 4 * B * FLAT * SEQ            # two per-token reduce dots
        + 4 * B * SEQ * FLAT            # two broadcast-back dots
        + 8 * B * FLAT                  # bias / square / epilogue elementwise
    )
    bytes_accessed = 4 * (
        latent.size + folded["W"].size + folded["consts"].size
        + folded["red"].size + folded["bcast"].size + B * FLAT
    )
    ce = pl.CostEstimate(flops=flops, transcendentals=B * FLAT, bytes_accessed=bytes_accessed)

    fn = pl.pallas_call(
        _decoder_kernel,
        out_shape=jax.ShapeDtypeStruct((B, FLAT), jnp.float32),
        in_specs=[vmem, vmem, vmem, vmem, vmem],
        out_specs=vmem,
        cost_estimate=ce,
    )
    out_flat = fn(latent, folded["W"], folded["consts"], folded["red"], folded["bcast"])
    # Free reshape in the wrapper (outside the kernel -> no in-kernel relayout).
    return out_flat.reshape(B, SEQ, D_MODEL)


# ------------------------------ pure-JAX reference (unfused) ---------------------------
def reference(latent, p):
    hp = "highest"
    h = jnp.dot(latent, p["W_dl"], precision=hp) + p["b_dl"]
    h = jnp.dot(h, p["W_gs"], precision=hp) + p["b_gs"]
    tok = h.reshape(latent.shape[0], -1, 100)
    t = jnp.einsum("bsc,cd->bsd", tok, p["W_gt"], precision=hp) + p["b_gt"]
    mu = jnp.mean(t, -1, keepdims=True)
    tc = t - mu
    var = jnp.mean(tc * tc, -1, keepdims=True)
    return tc * jax.lax.rsqrt(var + LN_EPS) * p["ln_w"] + p["ln_b"]


# -------------------------------------- main ----------------------------------------
def make_params(key):
    ks = jax.random.split(key, 8)
    n = lambda k, shape, s: jax.random.normal(k, shape, jnp.float32) * s
    return {
        "W_dl": n(ks[0], (LATENT_SIZE, DL_OUT), 0.1),
        "b_dl": n(ks[1], (DL_OUT,), 0.05),
        "W_gs": n(ks[2], (DL_OUT, GS_OUT), 0.1),
        "b_gs": n(ks[3], (GS_OUT,), 0.05),
        "W_gt": n(ks[4], (100, D_MODEL), 0.1),
        "b_gt": n(ks[5], (D_MODEL,), 0.05),
        "ln_w": 1.0 + n(ks[6], (D_MODEL,), 0.05),
        "ln_b": n(ks[7], (D_MODEL,), 0.05),
    }


if __name__ == "__main__":
    key = jax.random.PRNGKey(0)
    pkey, xkey = jax.random.split(key)
    params = make_params(pkey)
    latent = jax.random.normal(xkey, (BATCH, LATENT_SIZE), jnp.float32)

    folded = fold_params(params)
    out = latent_decoder(latent, folded)
    out = jax.block_until_ready(out)
    assert out.shape == (BATCH, SEQ, D_MODEL), out.shape

    ref = jax.block_until_ready(reference(latent, params))
    np.testing.assert_allclose(np.asarray(out), np.asarray(ref), rtol=5e-3, atol=5e-3)

    print("KERNEL_OK")
</pallas_src>

<mosaic_0001>
module attributes {stable_mosaic.version = 11 : i64} {
  func.func @_decoder_kernel(%arg0: memref<2x32xf32, #tpu.memory_space<vmem>>, %arg1: memref<32x1024xf32, #tpu.memory_space<vmem>>, %arg2: memref<3x1024xf32, #tpu.memory_space<vmem>>, %arg3: memref<1024x8xf32, #tpu.memory_space<vmem>>, %arg4: memref<8x1024xf32, #tpu.memory_space<vmem>>, %arg5: memref<2x1024xf32, #tpu.memory_space<vmem>>) attributes {dimension_semantics = [], scalar_prefetch = 0 : i64, scratch_operands = 0 : i64, tpu.core_type = #tpu.core_type<tc>} {
    %c0 = arith.constant 0 : index
    %c0_0 = arith.constant 0 : index
    %0 = vector.load %arg0[%c0, %c0_0] : memref<2x32xf32, #tpu.memory_space<vmem>>, vector<2x32xf32>
    %c0_1 = arith.constant 0 : index
    %c0_2 = arith.constant 0 : index
    %1 = vector.load %arg2[%c0_1, %c0_2] : memref<3x1024xf32, #tpu.memory_space<vmem>>, vector<3x1024xf32>
    %c0_3 = arith.constant 0 : index
    %c0_4 = arith.constant 0 : index
    %2 = vector.load %arg1[%c0_3, %c0_4] : memref<32x1024xf32, #tpu.memory_space<vmem>>, vector<32x1024xf32>
    %cst = arith.constant dense<0.000000e+00> : vector<2x1024xf32>
    %3 = tpu.matmul %0, %2, %cst {dimension_numbers = #tpu.dot_dimension_numbers<[1], [0], [0], [1], [0, 0, 1, 1], [], []>} : vector<2x32xf32>, vector<32x1024xf32>, vector<2x1024xf32> -> vector<2x1024xf32>
    %4 = vector.extract_strided_slice %1 {offsets = [0, 0], sizes = [1, 1024], strides = [1, 1]} : vector<3x1024xf32> to vector<1x1024xf32>
    %5 = vector.broadcast %4 : vector<1x1024xf32> to vector<2x1024xf32>
    %6 = arith.addf %3, %5 : vector<2x1024xf32>
    %c0_5 = arith.constant 0 : index
    %c0_6 = arith.constant 0 : index
    %7 = vector.load %arg3[%c0_5, %c0_6] : memref<1024x8xf32, #tpu.memory_space<vmem>>, vector<1024x8xf32>
    %c0_7 = arith.constant 0 : index
    %c0_8 = arith.constant 0 : index
    %8 = vector.load %arg4[%c0_7, %c0_8] : memref<8x1024xf32, #tpu.memory_space<vmem>>, vector<8x1024xf32>
    %cst_9 = arith.constant dense<0.000000e+00> : vector<2x8xf32>
    %9 = tpu.matmul %6, %7, %cst_9 {dimension_numbers = #tpu.dot_dimension_numbers<[1], [0], [0], [1], [0, 0, 1, 1], [], []>} : vector<2x1024xf32>, vector<1024x8xf32>, vector<2x8xf32> -> vector<2x8xf32>
    %10 = arith.mulf %6, %6 : vector<2x1024xf32>
    %cst_10 = arith.constant dense<0.000000e+00> : vector<2x8xf32>
    %11 = tpu.matmul %10, %7, %cst_10 {dimension_numbers = #tpu.dot_dimension_numbers<[1], [0], [0], [1], [0, 0, 1, 1], [], []>} : vector<2x1024xf32>, vector<1024x8xf32>, vector<2x8xf32> -> vector<2x8xf32>
    %cst_11 = arith.constant dense<0.000000e+00> : vector<2x1024xf32>
    %12 = tpu.matmul %9, %8, %cst_11 {dimension_numbers = #tpu.dot_dimension_numbers<[1], [0], [0], [1], [0, 0, 1, 1], [], []>} : vector<2x8xf32>, vector<8x1024xf32>, vector<2x1024xf32> -> vector<2x1024xf32>
    %cst_12 = arith.constant dense<0.000000e+00> : vector<2x1024xf32>
    %13 = tpu.matmul %11, %8, %cst_12 {dimension_numbers = #tpu.dot_dimension_numbers<[1], [0], [0], [1], [0, 0, 1, 1], [], []>} : vector<2x8xf32>, vector<8x1024xf32>, vector<2x1024xf32> -> vector<2x1024xf32>
    %14 = arith.mulf %12, %12 : vector<2x1024xf32>
    %15 = arith.subf %13, %14 : vector<2x1024xf32>
    %cst_13 = arith.constant 9.99999971E-10 : f32
    %16 = vector.broadcast %cst_13 : f32 to vector<2x1024xf32>
    %17 = arith.addf %15, %16 : vector<2x1024xf32>
    %18 = math.rsqrt %17 : vector<2x1024xf32>
    %19 = arith.subf %6, %12 : vector<2x1024xf32>
    %20 = arith.mulf %19, %18 : vector<2x1024xf32>
    %21 = vector.extract_strided_slice %1 {offsets = [1, 0], sizes = [1, 1024], strides = [1, 1]} : vector<3x1024xf32> to vector<1x1024xf32>
    %22 = vector.broadcast %21 : vector<1x1024xf32> to vector<2x1024xf32>
    %23 = arith.mulf %20, %22 : vector<2x1024xf32>
    %24 = vector.extract_strided_slice %1 {offsets = [2, 0], sizes = [1, 1024], strides = [1, 1]} : vector<3x1024xf32> to vector<1x1024xf32>
    %25 = vector.broadcast %24 : vector<1x1024xf32> to vector<2x1024xf32>
    %26 = arith.addf %23, %25 : vector<2x1024xf32>
    %c0_14 = arith.constant 0 : index
    %c0_15 = arith.constant 0 : index
    %27 = vector.load %arg5[%c0_14, %c0_15] : memref<2x1024xf32, #tpu.memory_space<vmem>>, vector<2x1024xf32>
    tpu.vector_store %arg5[%c0_14, %c0_15], %26 {strides = array<i32>} : memref<2x1024xf32, #tpu.memory_space<vmem>>, vector<2x1024xf32>,
    return
  }
}

</mosaic_0001>

<llo_original>
// kernel: tpu_custom_call.1
$region0: #{tpu_custom_call.1}
  #allocation0 [shape = 'u32[]', space=smem, size = 0x4, offset = 0x4, fixed_abs, tag = 'smem constant byte address 0x4 - core index']
  #allocation1 [shape = 'u32[144,128]{1,0:T(1,128)}', space=vmem, size = 0x12000, scoped, tag = 'internal scratch']
  %s0 = inlined_call_operand.vmem [shape: f32[2,32], index: 0, kind: input, shape index: {}]
  %s1 = inlined_call_operand.vmem [shape: f32[32,1024], index: 1, kind: input, shape index: {}]
  %s2 = inlined_call_operand.vmem [shape: f32[3,1024], index: 2, kind: input, shape index: {}]
  %s3 = inlined_call_operand.vmem [shape: f32[1024,8], index: 3, kind: input, shape index: {}]
  %s4 = inlined_call_operand.vmem [shape: f32[8,1024], index: 4, kind: input, shape index: {}]
  %s5 = inlined_call_operand.hbm [shape: f32[2,1024], index: 5, kind: output, shape index: {}]
  %s6 = sld [smem:[#allocation0]]
  $region30: #{tpu_custom_call.1} parent=0
    _
  %s8 = ssub.s32 1, %s6
  %s9 = scalar_select 0, %s8, %s6
  $region1: #{tpu_custom_call.1} parent=0
    #allocation2 [shape = 'u8[8192]{0}', space=vmem, size = 0x2000, scoped, tag = 'output window, operand 0, single buffered']
    #allocation3 [shape = 's32[1]{0}', space=sflag, size = 0x4, scoped, tag = 'scoped memory for tpu_custom_call.1']
    %10 = vsyncpa [#allocation3], 0
    // Predicated region
    $region2: #{tpu_custom_call.1} parent=1 // pred_check
      _
    $region3: #{tpu_custom_call.1} parent=1 // pred_check_branch
      %12 = sbr.rel (0) target = $region5
    $region4: #{tpu_custom_call.1} parent=1 // pred_region
      _
    $region5: #{tpu_custom_call.1} parent=1 // pred_fallthru
      _
    // Predicated region
    $region6: #{tpu_custom_call.1} parent=1 // pred_check
      _
    $region7: #{tpu_custom_call.1} parent=1 // pred_check_branch
      %14 = sbr.rel (0) target = $region9
    $region8: #{tpu_custom_call.1} parent=1 // pred_region
      _
    $region9: #{tpu_custom_call.1} parent=1 // pred_fallthru
      _
    // Predicated region
    $region10: #{tpu_custom_call.1} parent=1 // pred_check
      _
    $region11: #{tpu_custom_call.1} parent=1 // pred_check_branch
      %16 = sbr.rel (0) target = $region13
    $region12: #{tpu_custom_call.1} parent=1 // pred_region
      _
    $region13: #{tpu_custom_call.1} parent=1 // pred_fallthru
      _
    // Predicated region
    $region14: #{tpu_custom_call.1} parent=1 // pred_check
      _
    $region15: #{tpu_custom_call.1} parent=1 // pred_check_branch
      %18 = sbr.rel (0) target = $region17
    $region16: #{tpu_custom_call.1} parent=1 // pred_region
      _
    $region17: #{tpu_custom_call.1} parent=1 // pred_fallthru
      _
    // Predicated region
    $region18: #{tpu_custom_call.1} parent=1 // pred_check
      _
    $region19: #{tpu_custom_call.1} parent=1 // pred_check_branch
      %20 = sbr.rel (0) target = $region21
    $region20: #{tpu_custom_call.1} parent=1 // pred_region
      _
    $region21: #{tpu_custom_call.1} parent=1 // pred_fallthru
      _
    %v21 = vld [vmem:[%s0] sm:$0x3]
    %v22 = vld [vmem:[%s2] sm:$0x77]
    %v23 = vld [vmem:[%s2 + $0x8] sm:$0x77]
    %v24 = vld [vmem:[%s2 + $0x10] sm:$0x77]
    %v25 = vld [vmem:[%s2 + $0x18] sm:$0x77]
    %v26 = vld [vmem:[%s1] sm:$0xff]
    %v27 = vld [vmem:[%s1 + $0x8] sm:$0xff]
    %v28 = vld [vmem:[%s1 + $0x10] sm:$0xff]
    %v29 = vld [vmem:[%s1 + $0x18] sm:$0xff]
    %v30 = vld [vmem:[%s1 + $0x20] sm:$0xff]
    %v31 = vld [vmem:[%s1 + $0x28] sm:$0xff]
    %v32 = vld [vmem:[%s1 + $0x30] sm:$0xff]
    %v33 = vld [vmem:[%s1 + $0x38] sm:$0xff]
    %v34 = vld [vmem:[%s1 + $0x40] sm:$0xff]
    %v35 = vld [vmem:[%s1 + $0x48] sm:$0xff]
    %v36 = vld [vmem:[%s1 + $0x50] sm:$0xff]
    %v37 = vld [vmem:[%s1 + $0x58] sm:$0xff]
    %v38 = vld [vmem:[%s1 + $0x60] sm:$0xff]
    %v39 = vld [vmem:[%s1 + $0x68] sm:$0xff]
    %v40 = vld [vmem:[%s1 + $0x70] sm:$0xff]
    %v41 = vld [vmem:[%s1 + $0x78] sm:$0xff]
    %v42 = vld [vmem:[%s1 + $0x80] sm:$0xff]
    %v43 = vld [vmem:[%s1 + $0x88] sm:$0xff]
    %v44 = vld [vmem:[%s1 + $0x90] sm:$0xff]
    %v45 = vld [vmem:[%s1 + $0x98] sm:$0xff]
    %v46 = vld [vmem:[%s1 + $0xa0] sm:$0xff]
    %v47 = vld [vmem:[%s1 + $0xa8] sm:$0xff]
    %v48 = vld [vmem:[%s1 + $0xb0] sm:$0xff]
    %v49 = vld [vmem:[%s1 + $0xb8] sm:$0xff]
    %v50 = vld [vmem:[%s1 + $0xc0] sm:$0xff]
    %v51 = vld [vmem:[%s1 + $0xc8] sm:$0xff]
    %v52 = vld [vmem:[%s1 + $0xd0] sm:$0xff]
    %v53 = vld [vmem:[%s1 + $0xd8] sm:$0xff]
    %v54 = vld [vmem:[%s1 + $0xe0] sm:$0xff]
    %v55 = vld [vmem:[%s1 + $0xe8] sm:$0xff]
    %v56 = vld [vmem:[%s1 + $0xf0] sm:$0xff]
    %v57 = vld [vmem:[%s1 + $0xf8] sm:$0xff]
    %v62 = vlaneseq
    %v63 = vshrl.u32 %v62, 7
    %v64 = vsub.s32 0, %v63
    %v65 = vrot.slane %v22, %v64
    %v66 = vlaneseq
    %v67 = vshrl.u32 %v66, 7
    %v68 = vsub.s32 4, %v67
    %v69 = vrot.slane %v22, %v68
    %v70 = vlaneseq
    %v71 = vshrl.u32 %v70, 7
    %v72 = vsub.s32 0, %v71
    %v73 = vrot.slane %v23, %v72
    %v74 = vlaneseq
    %v75 = vshrl.u32 %v74, 7
    %v76 = vsub.s32 4, %v75
    %v77 = vrot.slane %v23, %v76
    %v78 = vlaneseq
    %v79 = vshrl.u32 %v78, 7
    %v80 = vsub.s32 0, %v79
    %v81 = vrot.slane %v24, %v80
    %v82 = vlaneseq
    %v83 = vshrl.u32 %v82, 7
    %v84 = vsub.s32 4, %v83
    %v85 = vrot.slane %v24, %v84
    %v86 = vlaneseq
    %v87 = vshrl.u32 %v86, 7
    %v88 = vsub.s32 0, %v87
    %v89 = vrot.slane %v25, %v88
    %v90 = vlaneseq
    %v91 = vshrl.u32 %v90, 7
    %v92 = vsub.s32 4, %v91
    %v93 = vrot.slane %v25, %v92
    %v102 = vlaneseq
    %v103 = vshrl.u32 %v102, 7
    %v104 = vsub.s32 0, %v103
    %v105 = vrot.slane %v65, %v104
    %v106 = vlaneseq
    %v107 = vshrl.u32 %v106, 7
    %v108 = vsub.s32 0, %v107
    %v109 = vrot.slane %v69, %v108
    %v110 = vlaneseq
    %v111 = vshrl.u32 %v110, 7
    %v112 = vsub.s32 0, %v111
    %v113 = vrot.slane %v73, %v112
    %v114 = vlaneseq
    %v115 = vshrl.u32 %v114, 7
    %v116 = vsub.s32 0, %v115
    %v117 = vrot.slane %v77, %v116
    %v118 = vlaneseq
    %v119 = vshrl.u32 %v118, 7
    %v120 = vsub.s32 0, %v119
    %v121 = vrot.slane %v81, %v120
    %v122 = vlaneseq
    %v123 = vshrl.u32 %v122, 7
    %v124 = vsub.s32 0, %v123
    %v125 = vrot.slane %v85, %v124
    %v126 = vlaneseq
    %v127 = vshrl.u32 %v126, 7
    %v128 = vsub.s32 0, %v127
    %v129 = vrot.slane %v89, %v128
    %v130 = vlaneseq
    %v131 = vshrl.u32 %v130, 7
    %v132 = vsub.s32 0, %v131
    %v133 = vrot.slane %v93, %v132
    %vm134 = vcmask 261120
    %v136 = vsel %vm134, %v21, 0
    %138 = vmatprep.subr.mxu0 %v27
    %139 = vmatpush1.msra.mxu0 %v26
    %140 = vmatprep.subr.mxu0 %v35
    %141 = vmatpush1.msra.mxu0 %v34
    %142 = vmatprep.subr.mxu0 %v43
    %143 = vmatpush1.msra.mxu0 %v42
    %144 = vmatprep.subr.mxu0 %v51
    %145 = vmatpush1.msra.mxu0 %v50
    %146 = vmatprep.subr.mxu0 0.0
    %147 = vmatpush1.msra.mxu0 0.0
    %148 = vmatprep.subr.mxu0 0.0
    %149 = vmatpush1.msra.mxu0 0.0
    %150 = vmatprep.subr.mxu0 0.0
    %151 = vmatpush1.msra.mxu0 0.0
    %152 = vmatprep.subr.mxu0 0.0
    %153 = vmatpush1.msra.mxu0 0.0
    %154 = vmatprep.subr.mxu0 0.0
    %155 = vmatpush1.msra.mxu0 0.0
    %156 = vmatprep.subr.mxu0 0.0
    %157 = vmatpush1.msra.mxu0 0.0
    %158 = vmatprep.subr.mxu0 0.0
    %159 = vmatpush1.msra.mxu0 0.0
    %160 = vmatprep.subr.mxu0 0.0
    %161 = vmatpush1.msra.mxu0 0.0
    %162 = vmatprep.subr.mxu0 0.0
    %163 = vmatpush1.msra.mxu0 0.0
    %164 = vmatprep.subr.mxu0 0.0
    %165 = vmatpush1.msra.mxu0 0.0
    %166 = vmatprep.subr.mxu0 0.0
    %167 = vmatpush1.msra.mxu0 0.0
    %168 = vmatprep.subr.mxu0 0.0
    %169 = vmatpush1.msra.mxu0 0.0
    %170 = vmatprep.subr.mxu0 0.0
    %171 = vmatpush1.msra.mxu0 0.0
    %172 = vmatprep.subr.mxu0 0.0
    %173 = vmatpush1.msra.mxu0 0.0
    %174 = vmatprep.subr.mxu0 0.0
    %175 = vmatpush1.msra.mxu0 0.0
    %176 = vmatprep.subr.mxu0 0.0
    %177 = vmatpush1.msra.mxu0 0.0
    %178 = vmatprep.subr.mxu0 0.0
    %179 = vmatpush1.msra.mxu0 0.0
    %180 = vmatprep.subr.mxu0 0.0
    %181 = vmatpush1.msra.mxu0 0.0
    %182 = vmatprep.subr.mxu0 0.0
    %183 = vmatpush1.msra.mxu0 0.0
    %184 = vmatprep.subr.mxu0 0.0
    %185 = vmatpush1.msra.mxu0 0.0
    %186 = vmatprep.subr.mxu0 0.0
    %187 = vmatpush1.msra.mxu0 0.0
    %188 = vmatprep.subr.mxu0 0.0
    %189 = vmatpush1.msra.mxu0 0.0
    %190 = vmatprep.subr.mxu0 0.0
    %191 = vmatpush1.msra.mxu0 0.0
    %192 = vmatprep.subr.mxu0 0.0
    %193 = vmatpush1.msra.mxu0 0.0
    %194 = vmatprep.subr.mxu0 0.0
    %195 = vmatpush1.msra.mxu0 0.0
    %196 = vmatprep.subr.mxu0 0.0
    %197 = vmatpush1.msra.mxu0 0.0
    %198 = vmatprep.subr.mxu0 0.0
    %199 = vmatpush1.msra.mxu0 0.0
    %200 = vmatprep.subr.mxu0 0.0
    %201 = vmatpush1.msra.mxu0 0.0
    %202 = vmatprep.mubr.f32.mxu0 0.0
    %203 = vmatmul.mubr.f32.gmra.mrb[0].mxu0 %v136
    %v204 = vpop.f32.mrb[0].mxu0
    %v205 = vadd.f32 %v105, %v204
    %v206 = vpop.f32.mrb[0].mxu0
    %v207 = vadd.f32 %v109, %v206
    %208 = vdwg.mxu0
    %209 = vmatprep.subr.mxu0 %v29
    %210 = vmatpush1.msra.mxu0 %v28
    %211 = vmatprep.subr.mxu0 %v37
    %212 = vmatpush1.msra.mxu0 %v36
    %213 = vmatprep.subr.mxu0 %v45
    %214 = vmatpush1.msra.mxu0 %v44
    %215 = vmatprep.subr.mxu0 %v53
    %216 = vmatpush1.msra.mxu0 %v52
    %217 = vmatprep.subr.mxu0 0.0
    %218 = vmatpush1.msra.mxu0 0.0
    %219 = vmatprep.subr.mxu0 0.0
    %220 = vmatpush1.msra.mxu0 0.0
    %221 = vmatprep.subr.mxu0 0.0
    %222 = vmatpush1.msra.mxu0 0.0
    %223 = vmatprep.subr.mxu0 0.0
    %224 = vmatpush1.msra.mxu0 0.0
    %225 = vmatprep.subr.mxu0 0.0
    %226 = vmatpush1.msra.mxu0 0.0
    %227 = vmatprep.subr.mxu0 0.0
    %228 = vmatpush1.msra.mxu0 0.0
    %229 = vmatprep.subr.mxu0 0.0
    %230 = vmatpush1.msra.mxu0 0.0
    %231 = vmatprep.subr.mxu0 0.0
    %232 = vmatpush1.msra.mxu0 0.0
    %233 = vmatprep.subr.mxu0 0.0
    %234 = vmatpush1.msra.mxu0 0.0
    %235 = vmatprep.subr.mxu0 0.0
    %236 = vmatpush1.msra.mxu0 0.0
    %237 = vmatprep.subr.mxu0 0.0
    %238 = vmatpush1.msra.mxu0 0.0
    %239 = vmatprep.subr.mxu0 0.0
    %240 = vmatpush1.msra.mxu0 0.0
    %241 = vmatprep.subr.mxu0 0.0
    %242 = vmatpush1.msra.mxu0 0.0
    %243 = vmatprep.subr.mxu0 0.0
    %244 = vmatpush1.msra.mxu0 0.0
    %245 = vmatprep.subr.mxu0 0.0
    %246 = vmatpush1.msra.mxu0 0.0
    %247 = vmatprep.subr.mxu0 0.0
    %248 = vmatpush1.msra.mxu0 0.0
    %249 = vmatprep.subr.mxu0 0.0
    %250 = vmatpush1.msra.mxu0 0.0
    %251 = vmatprep.subr.mxu0 0.0
    %252 = vmatpush1.msra.mxu0 0.0
    %253 = vmatprep.subr.mxu0 0.0
    %254 = vmatpush1.msra.mxu0 0.0
    %255 = vmatprep.subr.mxu0 0.0
    %256 = vmatpush1.msra.mxu0 0.0
    %257 = vmatprep.subr.mxu0 0.0
    %258 = vmatpush1.msra.mxu0 0.0
    %259 = vmatprep.subr.mxu0 0.0
    %260 = vmatpush1.msra.mxu0 0.0
    %261 = vmatprep.subr.mxu0 0.0
    %262 = vmatpush1.msra.mxu0 0.0
    %263 = vmatprep.subr.mxu0 0.0
    %264 = vmatpush1.msra.mxu0 0.0
    %265 = vmatprep.subr.mxu0 0.0
    %266 = vmatpush1.msra.mxu0 0.0
    %267 = vmatprep.subr.mxu0 0.0
    %268 = vmatpush1.msra.mxu0 0.0
    %269 = vmatprep.subr.mxu0 0.0
    %270 = vmatpush1.msra.mxu0 0.0
    %271 = vmatprep.subr.mxu0 0.0
    %272 = vmatpush1.msra.mxu0 0.0
    %273 = vmatprep.mubr.f32.mxu0 0.0
    %274 = vmatmul.mubr.f32.gmra.mrb[0].mxu0 %v136
    %v275 = vpop.f32.mrb[0].mxu0
    %v276 = vadd.f32 %v113, %v275
    %v277 = vpop.f32.mrb[0].mxu0
    %v278 = vadd.f32 %v117, %v277
    %279 = vdwg.mxu0
    %280 = vmatprep.subr.mxu0 %v31
    %281 = vmatpush1.msra.mxu0 %v30
    %282 = vmatprep.subr.mxu0 %v39
    %283 = vmatpush1.msra.mxu0 %v38
    %284 = vmatprep.subr.mxu0 %v47
    %285 = vmatpush1.msra.mxu0 %v46
    %286 = vmatprep.subr.mxu0 %v55
    %287 = vmatpush1.msra.mxu0 %v54
    %288 = vmatprep.subr.mxu0 0.0
    %289 = vmatpush1.msra.mxu0 0.0
    %290 = vmatprep.subr.mxu0 0.0
    %291 = vmatpush1.msra.mxu0 0.0
    %292 = vmatprep.subr.mxu0 0.0
    %293 = vmatpush1.msra.mxu0 0.0
    %294 = vmatprep.subr.mxu0 0.0
    %295 = vmatpush1.msra.mxu0 0.0
    %296 = vmatprep.subr.mxu0 0.0
    %297 = vmatpush1.msra.mxu0 0.0
    %298 = vmatprep.subr.mxu0 0.0
    %299 = vmatpush1.msra.mxu0 0.0
    %300 = vmatprep.subr.mxu0 0.0
    %301 = vmatpush1.msra.mxu0 0.0
    %302 = vmatprep.subr.mxu0 0.0
    %303 = vmatpush1.msra.mxu0 0.0
    %304 = vmatprep.subr.mxu0 0.0
    %305 = vmatpush1.msra.mxu0 0.0
    %306 = vmatprep.subr.mxu0 0.0
    %307 = vmatpush1.msra.mxu0 0.0
    %308 = vmatprep.subr.mxu0 0.0
    %309 = vmatpush1.msra.mxu0 0.0
    %310 = vmatprep.subr.mxu0 0.0
    %311 = vmatpush1.msra.mxu0 0.0
    %312 = vmatprep.subr.mxu0 0.0
    %313 = vmatpush1.msra.mxu0 0.0
    %314 = vmatprep.subr.mxu0 0.0
    %315 = vmatpush1.msra.mxu0 0.0
    %316 = vmatprep.subr.mxu0 0.0
    %317 = vmatpush1.msra.mxu0 0.0
    %318 = vmatprep.subr.mxu0 0.0
    %319 = vmatpush1.msra.mxu0 0.0
    %320 = vmatprep.subr.mxu0 0.0
    %321 = vmatpush1.msra.mxu0 0.0
    %322 = vmatprep.subr.mxu0 0.0
    %323 = vmatpush1.msra.mxu0 0.0
    %324 = vmatprep.subr.mxu0 0.0
    %325 = vmatpush1.msra.mxu0 0.0
    %326 = vmatprep.subr.mxu0 0.0
    %327 = vmatpush1.msra.mxu0 0.0
    %328 = vmatprep.subr.mxu0 0.0
    %329 = vmatpush1.msra.mxu0 0.0
    %330 = vmatprep.subr.mxu0 0.0
    %331 = vmatpush1.msra.mxu0 0.0
    %332 = vmatprep.subr.mxu0 0.0
    %333 = vmatpush1.msra.mxu0 0.0
    %334 = vmatprep.subr.mxu0 0.0
    %335 = vmatpush1.msra.mxu0 0.0
    %336 = vmatprep.subr.mxu0 0.0
    %337 = vmatpush1.msra.mxu0 0.0
    %338 = vmatprep.subr.mxu0 0.0
    %339 = vmatpush1.msra.mxu0 0.0
    %340 = vmatprep.subr.mxu0 0.0
    %341 = vmatpush1.msra.mxu0 0.0
    %342 = vmatprep.subr.mxu0 0.0
    %343 = vmatpush1.msra.mxu0 0.0
    %344 = vmatprep.mubr.f32.mxu0 0.0
    %345 = vmatmul.mubr.f32.gmra.mrb[0].mxu0 %v136
    %v346 = vpop.f32.mrb[0].mxu0
    %v347 = vadd.f32 %v121, %v346
    %v348 = vpop.f32.mrb[0].mxu0
    %v349 = vadd.f32 %v125, %v348
    %350 = vdwg.mxu0
    %351 = vmatprep.subr.mxu0 %v33
    %352 = vmatpush1.msra.mxu0 %v32
    %353 = vmatprep.subr.mxu0 %v41
    %354 = vmatpush1.msra.mxu0 %v40
    %355 = vmatprep.subr.mxu0 %v49
    %356 = vmatpush1.msra.mxu0 %v48
    %357 = vmatprep.subr.mxu0 %v57
    %358 = vmatpush1.msra.mxu0 %v56
    %359 = vmatprep.subr.mxu0 0.0
    %360 = vmatpush1.msra.mxu0 0.0
    %361 = vmatprep.subr.mxu0 0.0
    %362 = vmatpush1.msra.mxu0 0.0
    %363 = vmatprep.subr.mxu0 0.0
    %364 = vmatpush1.msra.mxu0 0.0
    %365 = vmatprep.subr.mxu0 0.0
    %366 = vmatpush1.msra.mxu0 0.0
    %367 = vmatprep.subr.mxu0 0.0
    %368 = vmatpush1.msra.mxu0 0.0
    %369 = vmatprep.subr.mxu0 0.0
    %370 = vmatpush1.msra.mxu0 0.0
    %371 = vmatprep.subr.mxu0 0.0
    %372 = vmatpush1.msra.mxu0 0.0
    %373 = vmatprep.subr.mxu0 0.0
    %374 = vmatpush1.msra.mxu0 0.0
    %375 = vmatprep.subr.mxu0 0.0
    %376 = vmatpush1.msra.mxu0 0.0
    %377 = vmatprep.subr.mxu0 0.0
    %378 = vmatpush1.msra.mxu0 0.0
    %379 = vmatprep.subr.mxu0 0.0
    %380 = vmatpush1.msra.mxu0 0.0
    %381 = vmatprep.subr.mxu0 0.0
    %382 = vmatpush1.msra.mxu0 0.0
    %383 = vmatprep.subr.mxu0 0.0
    %384 = vmatpush1.msra.mxu0 0.0
    %385 = vmatprep.subr.mxu0 0.0
    %386 = vmatpush1.msra.mxu0 0.0
    %387 = vmatprep.subr.mxu0 0.0
    %388 = vmatpush1.msra.mxu0 0.0
    %389 = vmatprep.subr.mxu0 0.0
    %390 = vmatpush1.msra.mxu0 0.0
    %391 = vmatprep.subr.mxu0 0.0
    %392 = vmatpush1.msra.mxu0 0.0
    %393 = vmatprep.subr.mxu0 0.0
    %394 = vmatpush1.msra.mxu0 0.0
    %395 = vmatprep.subr.mxu0 0.0
    %396 = vmatpush1.msra.mxu0 0.0
    %397 = vmatprep.subr.mxu0 0.0
    %398 = vmatpush1.msra.mxu0 0.0
    %399 = vmatprep.subr.mxu0 0.0
    %400 = vmatpush1.msra.mxu0 0.0
    %401 = vmatprep.subr.mxu0 0.0
    %402 = vmatpush1.msra.mxu0 0.0
    %403 = vmatprep.subr.mxu0 0.0
    %404 = vmatpush1.msra.mxu0 0.0
    %405 = vmatprep.subr.mxu0 0.0
    %406 = vmatpush1.msra.mxu0 0.0
    %407 = vmatprep.subr.mxu0 0.0
    %408 = vmatpush1.msra.mxu0 0.0
    %409 = vmatprep.subr.mxu0 0.0
    %410 = vmatpush1.msra.mxu0 0.0
    %411 = vmatprep.subr.mxu0 0.0
    %412 = vmatpush1.msra.mxu0 0.0
    %413 = vmatprep.subr.mxu0 0.0
    %414 = vmatpush1.msra.mxu0 0.0
    %415 = vmatprep.mubr.f32.mxu0 0.0
    %416 = vmatmul.mubr.f32.gmra.mrb[0].mxu0 %v136
    %v417 = vpop.f32.mrb[0].mxu0
    %v418 = vadd.f32 %v129, %v417
    %v419 = vpop.f32.mrb[0].mxu0
    %v420 = vadd.f32 %v133, %v419
    %421 = vdwg.mxu0
    %v422 = vld [vmem:[%s3] sm:$0xff]
    %v423 = vld [vmem:[%s3 + $0x8] sm:$0xff]
    %v424 = vld [vmem:[%s3 + $0x10] sm:$0xff]
    %v425 = vld [vmem:[%s3 + $0x18] sm:$0xff]
    %v426 = vld [vmem:[%s3 + $0x20] sm:$0xff]
    %v427 = vld [vmem:[%s3 + $0x28] sm:$0xff]
    %v428 = vld [vmem:[%s3 + $0x30] sm:$0xff]
    %v429 = vld [vmem:[%s3 + $0x38] sm:$0xff]
    %v430 = vld [vmem:[%s3 + $0x40] sm:$0xff]
    %v431 = vld [vmem:[%s3 + $0x48] sm:$0xff]
    %v432 = vld [vmem:[%s3 + $0x50] sm:$0xff]
    %v433 = vld [vmem:[%s3 + $0x58] sm:$0xff]
    %v434 = vld [vmem:[%s3 + $0x60] sm:$0xff]
    %v435 = vld [vmem:[%s3 + $0x68] sm:$0xff]
    %v436 = vld [vmem:[%s3 + $0x70] sm:$0xff]
    %v437 = vld [vmem:[%s3 + $0x78] sm:$0xff]
    %v438 = vld [vmem:[%s3 + $0x80] sm:$0xff]
    %v439 = vld [vmem:[%s3 + $0x88] sm:$0xff]
    %v440 = vld [vmem:[%s3 + $0x90] sm:$0xff]
    %v441 = vld [vmem:[%s3 + $0x98] sm:$0xff]
    %v442 = vld [vmem:[%s3 + $0xa0] sm:$0xff]
    %v443 = vld [vmem:[%s3 + $0xa8] sm:$0xff]
    %v444 = vld [vmem:[%s3 + $0xb0] sm:$0xff]
    %v445 = vld [vmem:[%s3 + $0xb8] sm:$0xff]
    %v446 = vld [vmem:[%s3 + $0xc0] sm:$0xff]
    %v447 = vld [vmem:[%s3 + $0xc8] sm:$0xff]
    %v448 = vld [vmem:[%s3 + $0xd0] sm:$0xff]
    %v449 = vld [vmem:[%s3 + $0xd8] sm:$0xff]
    %v450 = vld [vmem:[%s3 + $0xe0] sm:$0xff]
    %v451 = vld [vmem:[%s3 + $0xe8] sm:$0xff]
    %v452 = vld [vmem:[%s3 + $0xf0] sm:$0xff]
    %v453 = vld [vmem:[%s3 + $0xf8] sm:$0xff]
    %v454 = vld [vmem:[%s3 + $0x100] sm:$0xff]
    %v455 = vld [vmem:[%s3 + $0x108] sm:$0xff]
    %v456 = vld [vmem:[%s3 + $0x110] sm:$0xff]
    %v457 = vld [vmem:[%s3 + $0x118] sm:$0xff]
    %v458 = vld [vmem:[%s3 + $0x120] sm:$0xff]
    %v459 = vld [vmem:[%s3 + $0x128] sm:$0xff]
    %v460 = vld [vmem:[%s3 + $0x130] sm:$0xff]
    %v461 = vld [vmem:[%s3 + $0x138] sm:$0xff]
    %v462 = vld [vmem:[%s3 + $0x140] sm:$0xff]
    %v463 = vld [vmem:[%s3 + $0x148] sm:$0xff]
    %v464 = vld [vmem:[%s3 + $0x150] sm:$0xff]
    %v465 = vld [vmem:[%s3 + $0x158] sm:$0xff]
    %v466 = vld [vmem:[%s3 + $0x160] sm:$0xff]
    %v467 = vld [vmem:[%s3 + $0x168] sm:$0xff]
    %v468 = vld [vmem:[%s3 + $0x170] sm:$0xff]
    %v469 = vld [vmem:[%s3 + $0x178] sm:$0xff]
    %v470 = vld [vmem:[%s3 + $0x180] sm:$0xff]
    %v471 = vld [vmem:[%s3 + $0x188] sm:$0xff]
    %v472 = vld [vmem:[%s3 + $0x190] sm:$0xff]
    %v473 = vld [vmem:[%s3 + $0x198] sm:$0xff]
    %v474 = vld [vmem:[%s3 + $0x1a0] sm:$0xff]
    %v475 = vld [vmem:[%s3 + $0x1a8] sm:$0xff]
    %v476 = vld [vmem:[%s3 + $0x1b0] sm:$0xff]
    %v477 = vld [vmem:[%s3 + $0x1b8] sm:$0xff]
    %v478 = vld [vmem:[%s3 + $0x1c0] sm:$0xff]
    %v479 = vld [vmem:[%s3 + $0x1c8] sm:$0xff]
    %v480 = vld [vmem:[%s3 + $0x1d0] sm:$0xff]
    %v481 = vld [vmem:[%s3 + $0x1d8] sm:$0xff]
    %v482 = vld [vmem:[%s3 + $0x1e0] sm:$0xff]
    %v483 = vld [vmem:[%s3 + $0x1e8] sm:$0xff]
    %v484 = vld [vmem:[%s3 + $0x1f0] sm:$0xff]
    %v485 = vld [vmem:[%s3 + $0x1f8] sm:$0xff]
    %v486 = vld [vmem:[%s3 + $0x200] sm:$0xff]
    %v487 = vld [vmem:[%s3 + $0x208] sm:$0xff]
    %v488 = vld [vmem:[%s3 + $0x210] sm:$0xff]
    %v489 = vld [vmem:[%s3 + $0x218] sm:$0xff]
    %v490 = vld [vmem:[%s3 + $0x220] sm:$0xff]
    %v491 = vld [vmem:[%s3 + $0x228] sm:$0xff]
    %v492 = vld [vmem:[%s3 + $0x230] sm:$0xff]
    %v493 = vld [vmem:[%s3 + $0x238] sm:$0xff]
    %v494 = vld [vmem:[%s3 + $0x240] sm:$0xff]
    %v495 = vld [vmem:[%s3 + $0x248] sm:$0xff]
    %v496 = vld [vmem:[%s3 + $0x250] sm:$0xff]
    %v497 = vld [vmem:[%s3 + $0x258] sm:$0xff]
    %v498 = vld [vmem:[%s3 + $0x260] sm:$0xff]
    %v499 = vld [vmem:[%s3 + $0x268] sm:$0xff]
    %v500 = vld [vmem:[%s3 + $0x270] sm:$0xff]
    %v501 = vld [vmem:[%s3 + $0x278] sm:$0xff]
    %v502 = vld [vmem:[%s3 + $0x280] sm:$0xff]
    %v503 = vld [vmem:[%s3 + $0x288] sm:$0xff]
    %v504 = vld [vmem:[%s3 + $0x290] sm:$0xff]
    %v505 = vld [vmem:[%s3 + $0x298] sm:$0xff]
    %v506 = vld [vmem:[%s3 + $0x2a0] sm:$0xff]
    %v507 = vld [vmem:[%s3 + $0x2a8] sm:$0xff]
    %v508 = vld [vmem:[%s3 + $0x2b0] sm:$0xff]
    %v509 = vld [vmem:[%s3 + $0x2b8] sm:$0xff]
    %v510 = vld [vmem:[%s3 + $0x2c0] sm:$0xff]
    %v511 = vld [vmem:[%s3 + $0x2c8] sm:$0xff]
    %v512 = vld [vmem:[%s3 + $0x2d0] sm:$0xff]
    %v513 = vld [vmem:[%s3 + $0x2d8] sm:$0xff]
    %v514 = vld [vmem:[%s3 + $0x2e0] sm:$0xff]
    %v515 = vld [vmem:[%s3 + $0x2e8] sm:$0xff]
    %v516 = vld [vmem:[%s3 + $0x2f0] sm:$0xff]
    %v517 = vld [vmem:[%s3 + $0x2f8] sm:$0xff]
    %v518 = vld [vmem:[%s3 + $0x300] sm:$0xff]
    %v519 = vld [vmem:[%s3 + $0x308] sm:$0xff]
    %v520 = vld [vmem:[%s3 + $0x310] sm:$0xff]
    %v521 = vld [vmem:[%s3 + $0x318] sm:$0xff]
    %v522 = vld [vmem:[%s3 + $0x320] sm:$0xff]
    %v523 = vld [vmem:[%s3 + $0x328] sm:$0xff]
    %v524 = vld [vmem:[%s3 + $0x330] sm:$0xff]
    %v525 = vld [vmem:[%s3 + $0x338] sm:$0xff]
    %v526 = vld [vmem:[%s3 + $0x340] sm:$0xff]
    %v527 = vld [vmem:[%s3 + $0x348] sm:$0xff]
    %v528 = vld [vmem:[%s3 + $0x350] sm:$0xff]
    %v529 = vld [vmem:[%s3 + $0x358] sm:$0xff]
    %v530 = vld [vmem:[%s3 + $0x360] sm:$0xff]
    %v531 = vld [vmem:[%s3 + $0x368] sm:$0xff]
    %v532 = vld [vmem:[%s3 + $0x370] sm:$0xff]
    %v533 = vld [vmem:[%s3 + $0x378] sm:$0xff]
    %v534 = vld [vmem:[%s3 + $0x380] sm:$0xff]
    %v535 = vld [vmem:[%s3 + $0x388] sm:$0xff]
    %v536 = vld [vmem:[%s3 + $0x390] sm:$0xff]
    %v537 = vld [vmem:[%s3 + $0x398] sm:$0xff]
    %v538 = vld [vmem:[%s3 + $0x3a0] sm:$0xff]
    %v539 = vld [vmem:[%s3 + $0x3a8] sm:$0xff]
    %v540 = vld [vmem:[%s3 + $0x3b0] sm:$0xff]
    %v541 = vld [vmem:[%s3 + $0x3b8] sm:$0xff]
    %v542 = vld [vmem:[%s3 + $0x3c0] sm:$0xff]
    %v543 = vld [vmem:[%s3 + $0x3c8] sm:$0xff]
    %v544 = vld [vmem:[%s3 + $0x3d0] sm:$0xff]
    %v545 = vld [vmem:[%s3 + $0x3d8] sm:$0xff]
    %v546 = vld [vmem:[%s3 + $0x3e0] sm:$0xff]
    %v547 = vld [vmem:[%s3 + $0x3e8] sm:$0xff]
    %v548 = vld [vmem:[%s3 + $0x3f0] sm:$0xff]
    %v549 = vld [vmem:[%s3 + $0x3f8] sm:$0xff]
    %v550 = vld [vmem:[%s4] sm:$0xff]
    %v551 = vld [vmem:[%s4 + $0x8] sm:$0xff]
    %v552 = vld [vmem:[%s4 + $0x10] sm:$0xff]
    %v553 = vld [vmem:[%s4 + $0x18] sm:$0xff]
    %v554 = vld [vmem:[%s4 + $0x20] sm:$0xff]
    %v555 = vld [vmem:[%s4 + $0x28] sm:$0xff]
    %v556 = vld [vmem:[%s4 + $0x30] sm:$0xff]
    %v557 = vld [vmem:[%s4 + $0x38] sm:$0xff]
    %558 = vmatprep.subr.mxu0 0.0
    %559 = vmatpush1.msra.mxu0 %v422
    %560 = vmatprep.subr.mxu0 0.0
    %561 = vmatpush1.msra.mxu0 %v423
    %562 = vmatprep.subr.mxu0 0.0
    %563 = vmatpush1.msra.mxu0 %v424
    %564 = vmatprep.subr.mxu0 0.0
    %565 = vmatpush1.msra.mxu0 %v425
    %566 = vmatprep.subr.mxu0 0.0
    %567 = vmatpush1.msra.mxu0 %v426
    %568 = vmatprep.subr.mxu0 0.0
    %569 = vmatpush1.msra.mxu0 %v427
    %570 = vmatprep.subr.mxu0 0.0
    %571 = vmatpush1.msra.mxu0 %v428
    %572 = vmatprep.subr.mxu0 0.0
    %573 = vmatpush1.msra.mxu0 %v429
    %574 = vmatprep.subr.mxu0 0.0
    %575 = vmatpush1.msra.mxu0 %v430
    %576 = vmatprep.subr.mxu0 0.0
    %577 = vmatpush1.msra.mxu0 %v431
    %578 = vmatprep.subr.mxu0 0.0
    %579 = vmatpush1.msra.mxu0 %v432
    %580 = vmatprep.subr.mxu0 0.0
    %581 = vmatpush1.msra.mxu0 %v433
    %582 = vmatprep.subr.mxu0 0.0
    %583 = vmatpush1.msra.mxu0 %v434
    %584 = vmatprep.subr.mxu0 0.0
    %585 = vmatpush1.msra.mxu0 %v435
    %586 = vmatprep.subr.mxu0 0.0
    %587 = vmatpush1.msra.mxu0 %v436
    %588 = vmatprep.subr.mxu0 0.0
    %589 = vmatpush1.msra.mxu0 %v437
    %590 = vmatprep.subr.mxu0 0.0
    %591 = vmatpush1.msra.mxu0 %v438
    %592 = vmatprep.subr.mxu0 0.0
    %593 = vmatpush1.msra.mxu0 %v439
    %594 = vmatprep.subr.mxu0 0.0
    %595 = vmatpush1.msra.mxu0 %v440
    %596 = vmatprep.subr.mxu0 0.0
    %597 = vmatpush1.msra.mxu0 %v441
    %598 = vmatprep.subr.mxu0 0.0
    %599 = vmatpush1.msra.mxu0 %v442
    %600 = vmatprep.subr.mxu0 0.0
    %601 = vmatpush1.msra.mxu0 %v443
    %602 = vmatprep.subr.mxu0 0.0
    %603 = vmatpush1.msra.mxu0 %v444
    %604 = vmatprep.subr.mxu0 0.0
    %605 = vmatpush1.msra.mxu0 %v445
    %606 = vmatprep.subr.mxu0 0.0
    %607 = vmatpush1.msra.mxu0 %v446
    %608 = vmatprep.subr.mxu0 0.0
    %609 = vmatpush1.msra.mxu0 %v447
    %610 = vmatprep.subr.mxu0 0.0
    %611 = vmatpush1.msra.mxu0 %v448
    %612 = vmatprep.subr.mxu0 0.0
    %613 = vmatpush1.msra.mxu0 %v449
    %614 = vmatprep.subr.mxu0 0.0
    %615 = vmatpush1.msra.mxu0 %v450
    %616 = vmatprep.subr.mxu0 0.0
    %617 = vmatpush1.msra.mxu0 %v451
    %618 = vmatprep.subr.mxu0 0.0
    %619 = vmatpush1.msra.mxu0 %v452
    %620 = vmatprep.subr.mxu0 0.0
    %621 = vmatpush1.msra.mxu0 %v453
    %622 = vmatprep.mubr.f32.mxu0 %v207
    %623 = vmatmul.mubr.f32.gmra.mrb[0].mxu0 %v205
    %v624 = vpop.f32.mrb[0].mxu0
    %v625 = vadd.f32 0.0, %v624
    %v626 = vpop.f32.mrb[0].mxu0
    %627 = vdwg.mxu0
    %628 = vmatprep.subr.mxu0 0.0
    %629 = vmatpush1.msra.mxu0 %v454
    %630 = vmatprep.subr.mxu0 0.0
    %631 = vmatpush1.msra.mxu0 %v455
    %632 = vmatprep.subr.mxu0 0.0
    %633 = vmatpush1.msra.mxu0 %v456
    %634 = vmatprep.subr.mxu0 0.0
    %635 = vmatpush1.msra.mxu0 %v457
    %636 = vmatprep.subr.mxu0 0.0
    %637 = vmatpush1.msra.mxu0 %v458
    %638 = vmatprep.subr.mxu0 0.0
    %639 = vmatpush1.msra.mxu0 %v459
    %640 = vmatprep.subr.mxu0 0.0
    %641 = vmatpush1.msra.mxu0 %v460
    %642 = vmatprep.subr.mxu0 0.0
    %643 = vmatpush1.msra.mxu0 %v461
    %644 = vmatprep.subr.mxu0 0.0
    %645 = vmatpush1.msra.mxu0 %v462
    %646 = vmatprep.subr.mxu0 0.0
    %647 = vmatpush1.msra.mxu0 %v463
    %648 = vmatprep.subr.mxu0 0.0
    %649 = vmatpush1.msra.mxu0 %v464
    %650 = vmatprep.subr.mxu0 0.0
    %651 = vmatpush1.msra.mxu0 %v465
    %652 = vmatprep.subr.mxu0 0.0
    %653 = vmatpush1.msra.mxu0 %v466
    %654 = vmatprep.subr.mxu0 0.0
    %655 = vmatpush1.msra.mxu0 %v467
    %656 = vmatprep.subr.mxu0 0.0
    %657 = vmatpush1.msra.mxu0 %v468
    %658 = vmatprep.subr.mxu0 0.0
    %659 = vmatpush1.msra.mxu0 %v469
    %660 = vmatprep.subr.mxu0 0.0
    %661 = vmatpush1.msra.mxu0 %v470
    %662 = vmatprep.subr.mxu0 0.0
    %663 = vmatpush1.msra.mxu0 %v471
    %664 = vmatprep.subr.mxu0 0.0
    %665 = vmatpush1.msra.mxu0 %v472
    %666 = vmatprep.subr.mxu0 0.0
    %667 = vmatpush1.msra.mxu0 %v473
    %668 = vmatprep.subr.mxu0 0.0
    %669 = vmatpush1.msra.mxu0 %v474
    %670 = vmatprep.subr.mxu0 0.0
    %671 = vmatpush1.msra.mxu0 %v475
    %672 = vmatprep.subr.mxu0 0.0
    %673 = vmatpush1.msra.mxu0 %v476
    %674 = vmatprep.subr.mxu0 0.0
    %675 = vmatpush1.msra.mxu0 %v477
    %676 = vmatprep.subr.mxu0 0.0
    %677 = vmatpush1.msra.mxu0 %v478
    %678 = vmatprep.subr.mxu0 0.0
    %679 = vmatpush1.msra.mxu0 %v479
    %680 = vmatprep.subr.mxu0 0.0
    %681 = vmatpush1.msra.mxu0 %v480
    %682 = vmatprep.subr.mxu0 0.0
    %683 = vmatpush1.msra.mxu0 %v481
    %684 = vmatprep.subr.mxu0 0.0
    %685 = vmatpush1.msra.mxu0 %v482
    %686 = vmatprep.subr.mxu0 0.0
    %687 = vmatpush1.msra.mxu0 %v483
    %688 = vmatprep.subr.mxu0 0.0
    %689 = vmatpush1.msra.mxu0 %v484
    %690 = vmatprep.subr.mxu0 0.0
    %691 = vmatpush1.msra.mxu0 %v485
    %692 = vmatprep.mubr.f32.mxu0 %v278
    %693 = vmatmul.mubr.f32.gmra.mrb[0].mxu0 %v276
    %v694 = vpop.f32.mrb[0].mxu0
    %v695 = vadd.f32 %v625, %v694
    %v696 = vpop.f32.mrb[0].mxu0
    %697 = vdwg.mxu0
    %698 = vmatprep.subr.mxu0 0.0
    %699 = vmatpush1.msra.mxu0 %v486
    %700 = vmatprep.subr.mxu0 0.0
    %701 = vmatpush1.msra.mxu0 %v487
    %702 = vmatprep.subr.mxu0 0.0
    %703 = vmatpush1.msra.mxu0 %v488
    %704 = vmatprep.subr.mxu0 0.0
    %705 = vmatpush1.msra.mxu0 %v489
    %706 = vmatprep.subr.mxu0 0.0
    %707 = vmatpush1.msra.mxu0 %v490
    %708 = vmatprep.subr.mxu0 0.0
    %709 = vmatpush1.msra.mxu0 %v491
    %710 = vmatprep.subr.mxu0 0.0
    %711 = vmatpush1.msra.mxu0 %v492
    %712 = vmatprep.subr.mxu0 0.0
    %713 = vmatpush1.msra.mxu0 %v493
    %714 = vmatprep.subr.mxu0 0.0
    %715 = vmatpush1.msra.mxu0 %v494
    %716 = vmatprep.subr.mxu0 0.0
    %717 = vmatpush1.msra.mxu0 %v495
    %718 = vmatprep.subr.mxu0 0.0
    %719 = vmatpush1.msra.mxu0 %v496
    %720 = vmatprep.subr.mxu0 0.0
    %721 = vmatpush1.msra.mxu0 %v497
    %722 = vmatprep.subr.mxu0 0.0
    %723 = vmatpush1.msra.mxu0 %v498
    %724 = vmatprep.subr.mxu0 0.0
    %725 = vmatpush1.msra.mxu0 %v499
    %726 = vmatprep.subr.mxu0 0.0
    %727 = vmatpush1.msra.mxu0 %v500
    %728 = vmatprep.subr.mxu0 0.0
    %729 = vmatpush1.msra.mxu0 %v501
    %730 = vmatprep.subr.mxu0 0.0
    %731 = vmatpush1.msra.mxu0 %v502
    %732 = vmatprep.subr.mxu0 0.0
    %733 = vmatpush1.msra.mxu0 %v503
    %734 = vmatprep.subr.mxu0 0.0
    %735 = vmatpush1.msra.mxu0 %v504
    %736 = vmatprep.subr.mxu0 0.0
    %737 = vmatpush1.msra.mxu0 %v505
    %738 = vmatprep.subr.mxu0 0.0
    %739 = vmatpush1.msra.mxu0 %v506
    %740 = vmatprep.subr.mxu0 0.0
    %741 = vmatpush1.msra.mxu0 %v507
    %742 = vmatprep.subr.mxu0 0.0
    %743 = vmatpush1.msra.mxu0 %v508
    %744 = vmatprep.subr.mxu0 0.0
    %745 = vmatpush1.msra.mxu0 %v509
    %746 = vmatprep.subr.mxu0 0.0
    %747 = vmatpush1.msra.mxu0 %v510
    %748 = vmatprep.subr.mxu0 0.0
    %749 = vmatpush1.msra.mxu0 %v511
    %750 = vmatprep.subr.mxu0 0.0
    %751 = vmatpush1.msra.mxu0 %v512
    %752 = vmatprep.subr.mxu0 0.0
    %753 = vmatpush1.msra.mxu0 %v513
    %754 = vmatprep.subr.mxu0 0.0
    %755 = vmatpush1.msra.mxu0 %v514
    %756 = vmatprep.subr.mxu0 0.0
    %757 = vmatpush1.msra.mxu0 %v515
    %758 = vmatprep.subr.mxu0 0.0
    %759 = vmatpush1.msra.mxu0 %v516
    %760 = vmatprep.subr.mxu0 0.0
    %761 = vmatpush1.msra.mxu0 %v517
    %762 = vmatprep.mubr.f32.mxu0 %v349
    %763 = vmatmul.mubr.f32.gmra.mrb[0].mxu0 %v347
    %v764 = vpop.f32.mrb[0].mxu0
    %v765 = vadd.f32 %v695, %v764
    %v766 = vpop.f32.mrb[0].mxu0
    %767 = vdwg.mxu0
    %768 = vmatprep.subr.mxu0 0.0
    %769 = vmatpush1.msra.mxu0 %v518
    %770 = vmatprep.subr.mxu0 0.0
    %771 = vmatpush1.msra.mxu0 %v519
    %772 = vmatprep.subr.mxu0 0.0
    %773 = vmatpush1.msra.mxu0 %v520
    %774 = vmatprep.subr.mxu0 0.0
    %775 = vmatpush1.msra.mxu0 %v521
    %776 = vmatprep.subr.mxu0 0.0
    %777 = vmatpush1.msra.mxu0 %v522
    %778 = vmatprep.subr.mxu0 0.0
    %779 = vmatpush1.msra.mxu0 %v523
    %780 = vmatprep.subr.mxu0 0.0
    %781 = vmatpush1.msra.mxu0 %v524
    %782 = vmatprep.subr.mxu0 0.0
    %783 = vmatpush1.msra.mxu0 %v525
    %784 = vmatprep.subr.mxu0 0.0
    %785 = vmatpush1.msra.mxu0 %v526
    %786 = vmatprep.subr.mxu0 0.0
    %787 = vmatpush1.msra.mxu0 %v527
    %788 = vmatprep.subr.mxu0 0.0
    %789 = vmatpush1.msra.mxu0 %v528
    %790 = vmatprep.subr.mxu0 0.0
    %791 = vmatpush1.msra.mxu0 %v529
    %792 = vmatprep.subr.mxu0 0.0
    %793 = vmatpush1.msra.mxu0 %v530
    %794 = vmatprep.subr.mxu0 0.0
    %795 = vmatpush1.msra.mxu0 %v531
    %796 = vmatprep.subr.mxu0 0.0
    %797 = vmatpush1.msra.mxu0 %v532
    %798 = vmatprep.subr.mxu0 0.0
    %799 = vmatpush1.msra.mxu0 %v533
    %800 = vmatprep.subr.mxu0 0.0
    %801 = vmatpush1.msra.mxu0 %v534
    %802 = vmatprep.subr.mxu0 0.0
    %803 = vmatpush1.msra.mxu0 %v535
    %804 = vmatprep.subr.mxu0 0.0
    %805 = vmatpush1.msra.mxu0 %v536
    %806 = vmatprep.subr.mxu0 0.0
    %807 = vmatpush1.msra.mxu0 %v537
    %808 = vmatprep.subr.mxu0 0.0
    %809 = vmatpush1.msra.mxu0 %v538
    %810 = vmatprep.subr.mxu0 0.0
    %811 = vmatpush1.msra.mxu0 %v539
    %812 = vmatprep.subr.mxu0 0.0
    %813 = vmatpush1.msra.mxu0 %v540
    %814 = vmatprep.subr.mxu0 0.0
    %815 = vmatpush1.msra.mxu0 %v541
    %816 = vmatprep.subr.mxu0 0.0
    %817 = vmatpush1.msra.mxu0 %v542
    %818 = vmatprep.subr.mxu0 0.0
    %819 = vmatpush1.msra.mxu0 %v543
    %820 = vmatprep.subr.mxu0 0.0
    %821 = vmatpush1.msra.mxu0 %v544
    %822 = vmatprep.subr.mxu0 0.0
    %823 = vmatpush1.msra.mxu0 %v545
    %824 = vmatprep.subr.mxu0 0.0
    %825 = vmatpush1.msra.mxu0 %v546
    %826 = vmatprep.subr.mxu0 0.0
    %827 = vmatpush1.msra.mxu0 %v547
    %828 = vmatprep.subr.mxu0 0.0
    %829 = vmatpush1.msra.mxu0 %v548
    %830 = vmatprep.subr.mxu0 0.0
    %831 = vmatpush1.msra.mxu0 %v549
    %832 = vmatprep.mubr.f32.mxu0 %v420
    %833 = vmatmul.mubr.f32.gmra.mrb[0].mxu0 %v418
    %v834 = vpop.f32.mrb[0].mxu0
    %v835 = vadd.f32 %v765, %v834
    %v836 = vpop.f32.mrb[0].mxu0
    %837 = vdwg.mxu0
    %v838 = vmul.f32 %v205, %v205
    %v839 = vmul.f32 %v207, %v207
    %v840 = vmul.f32 %v276, %v276
    %v841 = vmul.f32 %v278, %v278
    %v842 = vmul.f32 %v347, %v347
    %v843 = vmul.f32 %v349, %v349
    %v844 = vmul.f32 %v418, %v418
    %v845 = vmul.f32 %v420, %v420
    %846 = vmatprep.subr.mxu0 0.0
    %847 = vmatpush1.msra.mxu0 %v422
    %848 = vmatprep.subr.mxu0 0.0
    %849 = vmatpush1.msra.mxu0 %v423
    %850 = vmatprep.subr.mxu0 0.0
    %851 = vmatpush1.msra.mxu0 %v424
    %852 = vmatprep.subr.mxu0 0.0
    %853 = vmatpush1.msra.mxu0 %v425
    %854 = vmatprep.subr.mxu0 0.0
    %855 = vmatpush1.msra.mxu0 %v426
    %856 = vmatprep.subr.mxu0 0.0
    %857 = vmatpush1.msra.mxu0 %v427
    %858 = vmatprep.subr.mxu0 0.0
    %859 = vmatpush1.msra.mxu0 %v428
    %860 = vmatprep.subr.mxu0 0.0
    %861 = vmatpush1.msra.mxu0 %v429
    %862 = vmatprep.subr.mxu0 0.0
    %863 = vmatpush1.msra.mxu0 %v430
    %864 = vmatprep.subr.mxu0 0.0
    %865 = vmatpush1.msra.mxu0 %v431
    %866 = vmatprep.subr.mxu0 0.0
    %867 = vmatpush1.msra.mxu0 %v432
    %868 = vmatprep.subr.mxu0 0.0
    %869 = vmatpush1.msra.mxu0 %v433
    %870 = vmatprep.subr.mxu0 0.0
    %871 = vmatpush1.msra.mxu0 %v434
    %872 = vmatprep.subr.mxu0 0.0
    %873 = vmatpush1.msra.mxu0 %v435
    %874 = vmatprep.subr.mxu0 0.0
    %875 = vmatpush1.msra.mxu0 %v436
    %876 = vmatprep.subr.mxu0 0.0
    %877 = vmatpush1.msra.mxu0 %v437
    %878 = vmatprep.subr.mxu0 0.0
    %879 = vmatpush1.msra.mxu0 %v438
    %880 = vmatprep.subr.mxu0 0.0
    %881 = vmatpush1.msra.mxu0 %v439
    %882 = vmatprep.subr.mxu0 0.0
    %883 = vmatpush1.msra.mxu0 %v440
    %884 = vmatprep.subr.mxu0 0.0
    %885 = vmatpush1.msra.mxu0 %v441
    %886 = vmatprep.subr.mxu0 0.0
    %887 = vmatpush1.msra.mxu0 %v442
    %888 = vmatprep.subr.mxu0 0.0
    %889 = vmatpush1.msra.mxu0 %v443
    %890 = vmatprep.subr.mxu0 0.0
    %891 = vmatpush1.msra.mxu0 %v444
    %892 = vmatprep.subr.mxu0 0.0
    %893 = vmatpush1.msra.mxu0 %v445
    %894 = vmatprep.subr.mxu0 0.0
    %895 = vmatpush1.msra.mxu0 %v446
    %896 = vmatprep.subr.mxu0 0.0
    %897 = vmatpush1.msra.mxu0 %v447
    %898 = vmatprep.subr.mxu0 0.0
    %899 = vmatpush1.msra.mxu0 %v448
    %900 = vmatprep.subr.mxu0 0.0
    %901 = vmatpush1.msra.mxu0 %v449
    %902 = vmatprep.subr.mxu0 0.0
    %903 = vmatpush1.msra.mxu0 %v450
    %904 = vmatprep.subr.mxu0 0.0
    %905 = vmatpush1.msra.mxu0 %v451
    %906 = vmatprep.subr.mxu0 0.0
    %907 = vmatpush1.msra.mxu0 %v452
    %908 = vmatprep.subr.mxu0 0.0
    %909 = vmatpush1.msra.mxu0 %v453
    %910 = vmatprep.mubr.f32.mxu0 %v839
    %911 = vmatmul.mubr.f32.gmra.mrb[0].mxu0 %v838
    %v912 = vpop.f32.mrb[0].mxu0
    %v913 = vadd.f32 0.0, %v912
    %v914 = vpop.f32.mrb[0].mxu0
    %915 = vdwg.mxu0
    %916 = vmatprep.subr.mxu0 0.0
    %917 = vmatpush1.msra.mxu0 %v454
    %918 = vmatprep.subr.mxu0 0.0
    %919 = vmatpush1.msra.mxu0 %v455
    %920 = vmatprep.subr.mxu0 0.0
    %921 = vmatpush1.msra.mxu0 %v456
    %922 = vmatprep.subr.mxu0 0.0
    %923 = vmatpush1.msra.mxu0 %v457
    %924 = vmatprep.subr.mxu0 0.0
    %925 = vmatpush1.msra.mxu0 %v458
    %926 = vmatprep.subr.mxu0 0.0
    %927 = vmatpush1.msra.mxu0 %v459
    %928 = vmatprep.subr.mxu0 0.0
    %929 = vmatpush1.msra.mxu0 %v460
    %930 = vmatprep.subr.mxu0 0.0
    %931 = vmatpush1.msra.mxu0 %v461
    %932 = vmatprep.subr.mxu0 0.0
    %933 = vmatpush1.msra.mxu0 %v462
    %934 = vmatprep.subr.mxu0 0.0
    %935 = vmatpush1.msra.mxu0 %v463
    %936 = vmatprep.subr.mxu0 0.0
    %937 = vmatpush1.msra.mxu0 %v464
    %938 = vmatprep.subr.mxu0 0.0
    %939 = vmatpush1.msra.mxu0 %v465
    %940 = vmatprep.subr.mxu0 0.0
    %941 = vmatpush1.msra.mxu0 %v466
    %942 = vmatprep.subr.mxu0 0.0
    %943 = vmatpush1.msra.mxu0 %v467
    %944 = vmatprep.subr.mxu0 0.0
    %945 = vmatpush1.msra.mxu0 %v468
    %946 = vmatprep.subr.mxu0 0.0
    %947 = vmatpush1.msra.mxu0 %v469
    %948 = vmatprep.subr.mxu0 0.0
    %949 = vmatpush1.msra.mxu0 %v470
    %950 = vmatprep.subr.mxu0 0.0
    %951 = vmatpush1.msra.mxu0 %v471
    %952 = vmatprep.subr.mxu0 0.0
    %953 = vmatpush1.msra.mxu0 %v472
    %954 = vmatprep.subr.mxu0 0.0
    %955 = vmatpush1.msra.mxu0 %v473
    %956 = vmatprep.subr.mxu0 0.0
    %957 = vmatpush1.msra.mxu0 %v474
    %958 = vmatprep.subr.mxu0 0.0
    %959 = vmatpush1.msra.mxu0 %v475
    %960 = vmatprep.subr.mxu0 0.0
    %961 = vmatpush1.msra.mxu0 %v476
    %962 = vmatprep.subr.mxu0 0.0
    %963 = vmatpush1.msra.mxu0 %v477
    %964 = vmatprep.subr.mxu0 0.0
    %965 = vmatpush1.msra.mxu0 %v478
    %966 = vmatprep.subr.mxu0 0.0
    %967 = vmatpush1.msra.mxu0 %v479
    %968 = vmatprep.subr.mxu0 0.0
    %969 = vmatpush1.msra.mxu0 %v480
    %970 = vmatprep.subr.mxu0 0.0
    %971 = vmatpush1.msra.mxu0 %v481
    %972 = vmatprep.subr.mxu0 0.0
    %973 = vmatpush1.msra.mxu0 %v482
    %974 = vmatprep.subr.mxu0 0.0
    %975 = vmatpush1.msra.mxu0 %v483
    %976 = vmatprep.subr.mxu0 0.0
    %977 = vmatpush1.msra.mxu0 %v484
    %978 = vmatprep.subr.mxu0 0.0
    %979 = vmatpush1.msra.mxu0 %v485
    %980 = vmatprep.mubr.f32.mxu0 %v841
    %981 = vmatmul.mubr.f32.gmra.mrb[0].mxu0 %v840
    %v982 = vpop.f32.mrb[0].mxu0
    %v983 = vadd.f32 %v913, %v982
    %v984 = vpop.f32.mrb[0].mxu0
    %985 = vdwg.mxu0
    %986 = vmatprep.subr.mxu0 0.0
    %987 = vmatpush1.msra.mxu0 %v486
    %988 = vmatprep.subr.mxu0 0.0
    %989 = vmatpush1.msra.mxu0 %v487
    %990 = vmatprep.subr.mxu0 0.0
    %991 = vmatpush1.msra.mxu0 %v488
    %992 = vmatprep.subr.mxu0 0.0
    %993 = vmatpush1.msra.mxu0 %v489
    %994 = vmatprep.subr.mxu0 0.0
    %995 = vmatpush1.msra.mxu0 %v490
    %996 = vmatprep.subr.mxu0 0.0
    %997 = vmatpush1.msra.mxu0 %v491
    %998 = vmatprep.subr.mxu0 0.0
    %999 = vmatpush1.msra.mxu0 %v492
    %1000 = vmatprep.subr.mxu0 0.0
    %1001 = vmatpush1.msra.mxu0 %v493
    %1002 = vmatprep.subr.mxu0 0.0
    %1003 = vmatpush1.msra.mxu0 %v494
    %1004 = vmatprep.subr.mxu0 0.0
    %1005 = vmatpush1.msra.mxu0 %v495
    %1006 = vmatprep.subr.mxu0 0.0
    %1007 = vmatpush1.msra.mxu0 %v496
    %1008 = vmatprep.subr.mxu0 0.0
    %1009 = vmatpush1.msra.mxu0 %v497
    %1010 = vmatprep.subr.mxu0 0.0
    %1011 = vmatpush1.msra.mxu0 %v498
    %1012 = vmatprep.subr.mxu0 0.0
    %1013 = vmatpush1.msra.mxu0 %v499
    %1014 = vmatprep.subr.mxu0 0.0
    %1015 = vmatpush1.msra.mxu0 %v500
    %1016 = vmatprep.subr.mxu0 0.0
    %1017 = vmatpush1.msra.mxu0 %v501
    %1018 = vmatprep.subr.mxu0 0.0
    %1019 = vmatpush1.msra.mxu0 %v502
    %1020 = vmatprep.subr.mxu0 0.0
    %1021 = vmatpush1.msra.mxu0 %v503
    %1022 = vmatprep.subr.mxu0 0.0
    %1023 = vmatpush1.msra.mxu0 %v504
    %1024 = vmatprep.subr.mxu0 0.0
    %1025 = vmatpush1.msra.mxu0 %v505
    %1026 = vmatprep.subr.mxu0 0.0
    %1027 = vmatpush1.msra.mxu0 %v506
    %1028 = vmatprep.subr.mxu0 0.0
    %1029 = vmatpush1.msra.mxu0 %v507
    %1030 = vmatprep.subr.mxu0 0.0
    %1031 = vmatpush1.msra.mxu0 %v508
    %1032 = vmatprep.subr.mxu0 0.0
    %1033 = vmatpush1.msra.mxu0 %v509
    %1034 = vmatprep.subr.mxu0 0.0
    %1035 = vmatpush1.msra.mxu0 %v510
    %1036 = vmatprep.subr.mxu0 0.0
    %1037 = vmatpush1.msra.mxu0 %v511
    %1038 = vmatprep.subr.mxu0 0.0
    %1039 = vmatpush1.msra.mxu0 %v512
    %1040 = vmatprep.subr.mxu0 0.0
    %1041 = vmatpush1.msra.mxu0 %v513
    %1042 = vmatprep.subr.mxu0 0.0
    %1043 = vmatpush1.msra.mxu0 %v514
    %1044 = vmatprep.subr.mxu0 0.0
    %1045 = vmatpush1.msra.mxu0 %v515
    %1046 = vmatprep.subr.mxu0 0.0
    %1047 = vmatpush1.msra.mxu0 %v516
    %1048 = vmatprep.subr.mxu0 0.0
    %1049 = vmatpush1.msra.mxu0 %v517
    %1050 = vmatprep.mubr.f32.mxu0 %v843
    %1051 = vmatmul.mubr.f32.gmra.mrb[0].mxu0 %v842
    %v1052 = vpop.f32.mrb[0].mxu0
    %v1053 = vadd.f32 %v983, %v1052
    %v1054 = vpop.f32.mrb[0].mxu0
    %1055 = vdwg.mxu0
    %1056 = vmatprep.subr.mxu0 0.0
    %1057 = vmatpush1.msra.mxu0 %v518
    %1058 = vmatprep.subr.mxu0 0.0
    %1059 = vmatpush1.msra.mxu0 %v519
    %1060 = vmatprep.subr.mxu0 0.0
    %1061 = vmatpush1.msra.mxu0 %v520
    %1062 = vmatprep.subr.mxu0 0.0
    %1063 = vmatpush1.msra.mxu0 %v521
    %1064 = vmatprep.subr.mxu0 0.0
    %1065 = vmatpush1.msra.mxu0 %v522
    %1066 = vmatprep.subr.mxu0 0.0
    %1067 = vmatpush1.msra.mxu0 %v523
    %1068 = vmatprep.subr.mxu0 0.0
    %1069 = vmatpush1.msra.mxu0 %v524
    %1070 = vmatprep.subr.mxu0 0.0
    %1071 = vmatpush1.msra.mxu0 %v525
    %1072 = vmatprep.subr.mxu0 0.0
    %1073 = vmatpush1.msra.mxu0 %v526
    %1074 = vmatprep.subr.mxu0 0.0
    %1075 = vmatpush1.msra.mxu0 %v527
    %1076 = vmatprep.subr.mxu0 0.0
    %1077 = vmatpush1.msra.mxu0 %v528
    %1078 = vmatprep.subr.mxu0 0.0
    %1079 = vmatpush1.msra.mxu0 %v529
    %1080 = vmatprep.subr.mxu0 0.0
    %1081 = vmatpush1.msra.mxu0 %v530
    %1082 = vmatprep.subr.mxu0 0.0
    %1083 = vmatpush1.msra.mxu0 %v531
    %1084 = vmatprep.subr.mxu0 0.0
    %1085 = vmatpush1.msra.mxu0 %v532
    %1086 = vmatprep.subr.mxu0 0.0
    %1087 = vmatpush1.msra.mxu0 %v533
    %1088 = vmatprep.subr.mxu0 0.0
    %1089 = vmatpush1.msra.mxu0 %v534
    %1090 = vmatprep.subr.mxu0 0.0
    %1091 = vmatpush1.msra.mxu0 %v535
    %1092 = vmatprep.subr.mxu0 0.0
    %1093 = vmatpush1.msra.mxu0 %v536
    %1094 = vmatprep.subr.mxu0 0.0
    %1095 = vmatpush1.msra.mxu0 %v537
    %1096 = vmatprep.subr.mxu0 0.0
    %1097 = vmatpush1.msra.mxu0 %v538
    %1098 = vmatprep.subr.mxu0 0.0
    %1099 = vmatpush1.msra.mxu0 %v539
    %1100 = vmatprep.subr.mxu0 0.0
    %1101 = vmatpush1.msra.mxu0 %v540
    %1102 = vmatprep.subr.mxu0 0.0
    %1103 = vmatpush1.msra.mxu0 %v541
    %1104 = vmatprep.subr.mxu0 0.0
    %1105 = vmatpush1.msra.mxu0 %v542
    %1106 = vmatprep.subr.mxu0 0.0
    %1107 = vmatpush1.msra.mxu0 %v543
    %1108 = vmatprep.subr.mxu0 0.0
    %1109 = vmatpush1.msra.mxu0 %v544
    %1110 = vmatprep.subr.mxu0 0.0
    %1111 = vmatpush1.msra.mxu0 %v545
    %1112 = vmatprep.subr.mxu0 0.0
    %1113 = vmatpush1.msra.mxu0 %v546
    %1114 = vmatprep.subr.mxu0 0.0
    %1115 = vmatpush1.msra.mxu0 %v547
    %1116 = vmatprep.subr.mxu0 0.0
    %1117 = vmatpush1.msra.mxu0 %v548
    %1118 = vmatprep.subr.mxu0 0.0
    %1119 = vmatpush1.msra.mxu0 %v549
    %1120 = vmatprep.mubr.f32.mxu0 %v845
    %1121 = vmatmul.mubr.f32.gmra.mrb[0].mxu0 %v844
    %v1122 = vpop.f32.mrb[0].mxu0
    %v1123 = vadd.f32 %v1053, %v1122
    %v1124 = vpop.f32.mrb[0].mxu0
    %1125 = vdwg.mxu0
    %vm1126 = vcmask 64512
    %v1128 = vsel %vm1126, %v835, 0
    %1130 = vmatprep.subr.mxu0 %v551
    %1131 = vmatpush1.msra.mxu0 %v550
    %1132 = vmatprep.subr.mxu0 0.0
    %1133 = vmatpush1.msra.mxu0 0.0
    %1134 = vmatprep.subr.mxu0 0.0
    %1135 = vmatpush1.msra.mxu0 0.0
    %1136 = vmatprep.subr.mxu0 0.0
    %1137 = vmatpush1.msra.mxu0 0.0
    %1138 = vmatprep.subr.mxu0 0.0
    %1139 = vmatpush1.msra.mxu0 0.0
    %1140 = vmatprep.subr.mxu0 0.0
    %1141 = vmatpush1.msra.mxu0 0.0
    %1142 = vmatprep.subr.mxu0 0.0
    %1143 = vmatpush1.msra.mxu0 0.0
    %1144 = vmatprep.subr.mxu0 0.0
    %1145 = vmatpush1.msra.mxu0 0.0
    %1146 = vmatprep.subr.mxu0 0.0
    %1147 = vmatpush1.msra.mxu0 0.0
    %1148 = vmatprep.subr.mxu0 0.0
    %1149 = vmatpush1.msra.mxu0 0.0
    %1150 = vmatprep.subr.mxu0 0.0
    %1151 = vmatpush1.msra.mxu0 0.0
    %1152 = vmatprep.subr.mxu0 0.0
    %1153 = vmatpush1.msra.mxu0 0.0
    %1154 = vmatprep.subr.mxu0 0.0
    %1155 = vmatpush1.msra.mxu0 0.0
    %1156 = vmatprep.subr.mxu0 0.0
    %1157 = vmatpush1.msra.mxu0 0.0
    %1158 = vmatprep.subr.mxu0 0.0
    %1159 = vmatpush1.msra.mxu0 0.0
    %1160 = vmatprep.subr.mxu0 0.0
    %1161 = vmatpush1.msra.mxu0 0.0
    %1162 = vmatprep.subr.mxu0 0.0
    %1163 = vmatpush1.msra.mxu0 0.0
    %1164 = vmatprep.subr.mxu0 0.0
    %1165 = vmatpush1.msra.mxu0 0.0
    %1166 = vmatprep.subr.mxu0 0.0
    %1167 = vmatpush1.msra.mxu0 0.0
    %1168 = vmatprep.subr.mxu0 0.0
    %1169 = vmatpush1.msra.mxu0 0.0
    %1170 = vmatprep.subr.mxu0 0.0
    %1171 = vmatpush1.msra.mxu0 0.0
    %1172 = vmatprep.subr.mxu0 0.0
    %1173 = vmatpush1.msra.mxu0 0.0
    %1174 = vmatprep.subr.mxu0 0.0
    %1175 = vmatpush1.msra.mxu0 0.0
    %1176 = vmatprep.subr.mxu0 0.0
    %1177 = vmatpush1.msra.mxu0 0.0
    %1178 = vmatprep.subr.mxu0 0.0
    %1179 = vmatpush1.msra.mxu0 0.0
    %1180 = vmatprep.subr.mxu0 0.0
    %1181 = vmatpush1.msra.mxu0 0.0
    %1182 = vmatprep.subr.mxu0 0.0
    %1183 = vmatpush1.msra.mxu0 0.0
    %1184 = vmatprep.subr.mxu0 0.0
    %1185 = vmatpush1.msra.mxu0 0.0
    %1186 = vmatprep.subr.mxu0 0.0
    %1187 = vmatpush1.msra.mxu0 0.0
    %1188 = vmatprep.subr.mxu0 0.0
    %1189 = vmatpush1.msra.mxu0 0.0
    %1190 = vmatprep.subr.mxu0 0.0
    %1191 = vmatpush1.msra.mxu0 0.0
    %1192 = vmatprep.subr.mxu0 0.0
    %1193 = vmatpush1.msra.mxu0 0.0
    %1194 = vmatprep.mubr.f32.mxu0 0.0
    %1195 = vmatmul.mubr.f32.gmra.mrb[0].mxu0 %v1128
    %v1196 = vpop.f32.mrb[0].mxu0
    %v1197 = vadd.f32 0.0, %v1196
    %v1198 = vpop.f32.mrb[0].mxu0
    %v1199 = vadd.f32 0.0, %v1198
    %1200 = vdwg.mxu0
    %1201 = vmatprep.subr.mxu0 %v553
    %1202 = vmatpush1.msra.mxu0 %v552
    %1203 = vmatprep.subr.mxu0 0.0
    %1204 = vmatpush1.msra.mxu0 0.0
    %1205 = vmatprep.subr.mxu0 0.0
    %1206 = vmatpush1.msra.mxu0 0.0
    %1207 = vmatprep.subr.mxu0 0.0
    %1208 = vmatpush1.msra.mxu0 0.0
    %1209 = vmatprep.subr.mxu0 0.0
    %1210 = vmatpush1.msra.mxu0 0.0
    %1211 = vmatprep.subr.mxu0 0.0
    %1212 = vmatpush1.msra.mxu0 0.0
    %1213 = vmatprep.subr.mxu0 0.0
    %1214 = vmatpush1.msra.mxu0 0.0
    %1215 = vmatprep.subr.mxu0 0.0
    %1216 = vmatpush1.msra.mxu0 0.0
    %1217 = vmatprep.subr.mxu0 0.0
    %1218 = vmatpush1.msra.mxu0 0.0
    %1219 = vmatprep.subr.mxu0 0.0
    %1220 = vmatpush1.msra.mxu0 0.0
    %1221 = vmatprep.subr.mxu0 0.0
    %1222 = vmatpush1.msra.mxu0 0.0
    %1223 = vmatprep.subr.mxu0 0.0
    %1224 = vmatpush1.msra.mxu0 0.0
    %1225 = vmatprep.subr.mxu0 0.0
    %1226 = vmatpush1.msra.mxu0 0.0
    %1227 = vmatprep.subr.mxu0 0.0
    %1228 = vmatpush1.msra.mxu0 0.0
    %1229 = vmatprep.subr.mxu0 0.0
    %1230 = vmatpush1.msra.mxu0 0.0
    %1231 = vmatprep.subr.mxu0 0.0
    %1232 = vmatpush1.msra.mxu0 0.0
    %1233 = vmatprep.subr.mxu0 0.0
    %1234 = vmatpush1.msra.mxu0 0.0
    %1235 = vmatprep.subr.mxu0 0.0
    %1236 = vmatpush1.msra.mxu0 0.0
    %1237 = vmatprep.subr.mxu0 0.0
    %1238 = vmatpush1.msra.mxu0 0.0
    %1239 = vmatprep.subr.mxu0 0.0
    %1240 = vmatpush1.msra.mxu0 0.0
    %1241 = vmatprep.subr.mxu0 0.0
    %1242 = vmatpush1.msra.mxu0 0.0
    %1243 = vmatprep.subr.mxu0 0.0
    %1244 = vmatpush1.msra.mxu0 0.0
    %1245 = vmatprep.subr.mxu0 0.0
    %1246 = vmatpush1.msra.mxu0 0.0
    %1247 = vmatprep.subr.mxu0 0.0
    %1248 = vmatpush1.msra.mxu0 0.0
    %1249 = vmatprep.subr.mxu0 0.0
    %1250 = vmatpush1.msra.mxu0 0.0
    %1251 = vmatprep.subr.mxu0 0.0
    %1252 = vmatpush1.msra.mxu0 0.0
    %1253 = vmatprep.subr.mxu0 0.0
    %1254 = vmatpush1.msra.mxu0 0.0
    %1255 = vmatprep.subr.mxu0 0.0
    %1256 = vmatpush1.msra.mxu0 0.0
    %1257 = vmatprep.subr.mxu0 0.0
    %1258 = vmatpush1.msra.mxu0 0.0
    %1259 = vmatprep.subr.mxu0 0.0
    %1260 = vmatpush1.msra.mxu0 0.0
    %1261 = vmatprep.subr.mxu0 0.0
    %1262 = vmatpush1.msra.mxu0 0.0
    %1263 = vmatprep.subr.mxu0 0.0
    %1264 = vmatpush1.msra.mxu0 0.0
    %1265 = vmatprep.mubr.f32.mxu0 0.0
    %1266 = vmatmul.mubr.f32.gmra.mrb[0].mxu0 %v1128
    %v1267 = vpop.f32.mrb[0].mxu0
    %v1268 = vadd.f32 0.0, %v1267
    %v1269 = vpop.f32.mrb[0].mxu0
    %v1270 = vadd.f32 0.0, %v1269
    %1271 = vdwg.mxu0
    %1272 = vmatprep.subr.mxu0 %v555
    %1273 = vmatpush1.msra.mxu0 %v554
    %1274 = vmatprep.subr.mxu0 0.0
    %1275 = vmatpush1.msra.mxu0 0.0
    %1276 = vmatprep.subr.mxu0 0.0
    %1277 = vmatpush1.msra.mxu0 0.0
    %1278 = vmatprep.subr.mxu0 0.0
    %1279 = vmatpush1.msra.mxu0 0.0
    %1280 = vmatprep.subr.mxu0 0.0
    %1281 = vmatpush1.msra.mxu0 0.0
    %1282 = vmatprep.subr.mxu0 0.0
    %1283 = vmatpush1.msra.mxu0 0.0
    %1284 = vmatprep.subr.mxu0 0.0
    %1285 = vmatpush1.msra.mxu0 0.0
    %1286 = vmatprep.subr.mxu0 0.0
    %1287 = vmatpush1.msra.mxu0 0.0
    %1288 = vmatprep.subr.mxu0 0.0
    %1289 = vmatpush1.msra.mxu0 0.0
    %1290 = vmatprep.subr.mxu0 0.0
    %1291 = vmatpush1.msra.mxu0 0.0
    %1292 = vmatprep.subr.mxu0 0.0
    %1293 = vmatpush1.msra.mxu0 0.0
    %1294 = vmatprep.subr.mxu0 0.0
    %1295 = vmatpush1.msra.mxu0 0.0
    %1296 = vmatprep.subr.mxu0 0.0
    %1297 = vmatpush1.msra.mxu0 0.0
    %1298 = vmatprep.subr.mxu0 0.0
    %1299 = vmatpush1.msra.mxu0 0.0
    %1300 = vmatprep.subr.mxu0 0.0
    %1301 = vmatpush1.msra.mxu0 0.0
    %1302 = vmatprep.subr.mxu0 0.0
    %1303 = vmatpush1.msra.mxu0 0.0
    %1304 = vmatprep.subr.mxu0 0.0
    %1305 = vmatpush1.msra.mxu0 0.0
    %1306 = vmatprep.subr.mxu0 0.0
    %1307 = vmatpush1.msra.mxu0 0.0
    %1308 = vmatprep.subr.mxu0 0.0
    %1309 = vmatpush1.msra.mxu0 0.0
    %1310 = vmatprep.subr.mxu0 0.0
    %1311 = vmatpush1.msra.mxu0 0.0
    %1312 = vmatprep.subr.mxu0 0.0
    %1313 = vmatpush1.msra.mxu0 0.0
    %1314 = vmatprep.subr.mxu0 0.0
    %1315 = vmatpush1.msra.mxu0 0.0
    %1316 = vmatprep.subr.mxu0 0.0
    %1317 = vmatpush1.msra.mxu0 0.0
    %1318 = vmatprep.subr.mxu0 0.0
    %1319 = vmatpush1.msra.mxu0 0.0
    %1320 = vmatprep.subr.mxu0 0.0
    %1321 = vmatpush1.msra.mxu0 0.0
    %1322 = vmatprep.subr.mxu0 0.0
    %1323 = vmatpush1.msra.mxu0 0.0
    %1324 = vmatprep.subr.mxu0 0.0
    %1325 = vmatpush1.msra.mxu0 0.0
    %1326 = vmatprep.subr.mxu0 0.0
    %1327 = vmatpush1.msra.mxu0 0.0
    %1328 = vmatprep.subr.mxu0 0.0
    %1329 = vmatpush1.msra.mxu0 0.0
    %1330 = vmatprep.subr.mxu0 0.0
    %1331 = vmatpush1.msra.mxu0 0.0
    %1332 = vmatprep.subr.mxu0 0.0
    %1333 = vmatpush1.msra.mxu0 0.0
    %1334 = vmatprep.subr.mxu0 0.0
    %1335 = vmatpush1.msra.mxu0 0.0
    %1336 = vmatprep.mubr.f32.mxu0 0.0
    %1337 = vmatmul.mubr.f32.gmra.mrb[0].mxu0 %v1128
    %v1338 = vpop.f32.mrb[0].mxu0
    %v1339 = vadd.f32 0.0, %v1338
    %v1340 = vpop.f32.mrb[0].mxu0
    %v1341 = vadd.f32 0.0, %v1340
    %1342 = vdwg.mxu0
    %1343 = vmatprep.subr.mxu0 %v557
    %1344 = vmatpush1.msra.mxu0 %v556
    %1345 = vmatprep.subr.mxu0 0.0
    %1346 = vmatpush1.msra.mxu0 0.0
    %1347 = vmatprep.subr.mxu0 0.0
    %1348 = vmatpush1.msra.mxu0 0.0
    %1349 = vmatprep.subr.mxu0 0.0
    %1350 = vmatpush1.msra.mxu0 0.0
    %1351 = vmatprep.subr.mxu0 0.0
    %1352 = vmatpush1.msra.mxu0 0.0
    %1353 = vmatprep.subr.mxu0 0.0
    %1354 = vmatpush1.msra.mxu0 0.0
    %1355 = vmatprep.subr.mxu0 0.0
    %1356 = vmatpush1.msra.mxu0 0.0
    %1357 = vmatprep.subr.mxu0 0.0
    %1358 = vmatpush1.msra.mxu0 0.0
    %1359 = vmatprep.subr.mxu0 0.0
    %1360 = vmatpush1.msra.mxu0 0.0
    %1361 = vmatprep.subr.mxu0 0.0
    %1362 = vmatpush1.msra.mxu0 0.0
    %1363 = vmatprep.subr.mxu0 0.0
    %1364 = vmatpush1.msra.mxu0 0.0
    %1365 = vmatprep.subr.mxu0 0.0
    %1366 = vmatpush1.msra.mxu0 0.0
    %1367 = vmatprep.subr.mxu0 0.0
    %1368 = vmatpush1.msra.mxu0 0.0
    %1369 = vmatprep.subr.mxu0 0.0
    %1370 = vmatpush1.msra.mxu0 0.0
    %1371 = vmatprep.subr.mxu0 0.0
    %1372 = vmatpush1.msra.mxu0 0.0
    %1373 = vmatprep.subr.mxu0 0.0
    %1374 = vmatpush1.msra.mxu0 0.0
    %1375 = vmatprep.subr.mxu0 0.0
    %1376 = vmatpush1.msra.mxu0 0.0
    %1377 = vmatprep.subr.mxu0 0.0
    %1378 = vmatpush1.msra.mxu0 0.0
    %1379 = vmatprep.subr.mxu0 0.0
    %1380 = vmatpush1.msra.mxu0 0.0
    %1381 = vmatprep.subr.mxu0 0.0
    %1382 = vmatpush1.msra.mxu0 0.0
    %1383 = vmatprep.subr.mxu0 0.0
    %1384 = vmatpush1.msra.mxu0 0.0
    %1385 = vmatprep.subr.mxu0 0.0
    %1386 = vmatpush1.msra.mxu0 0.0
    %1387 = vmatprep.subr.mxu0 0.0
    %1388 = vmatpush1.msra.mxu0 0.0
    %1389 = vmatprep.subr.mxu0 0.0
    %1390 = vmatpush1.msra.mxu0 0.0
    %1391 = vmatprep.subr.mxu0 0.0
    %1392 = vmatpush1.msra.mxu0 0.0
    %1393 = vmatprep.subr.mxu0 0.0
    %1394 = vmatpush1.msra.mxu0 0.0
    %1395 = vmatprep.subr.mxu0 0.0
    %1396 = vmatpush1.msra.mxu0 0.0
    %1397 = vmatprep.subr.mxu0 0.0
    %1398 = vmatpush1.msra.mxu0 0.0
    %1399 = vmatprep.subr.mxu0 0.0
    %1400 = vmatpush1.msra.mxu0 0.0
    %1401 = vmatprep.subr.mxu0 0.0
    %1402 = vmatpush1.msra.mxu0 0.0
    %1403 = vmatprep.subr.mxu0 0.0
    %1404 = vmatpush1.msra.mxu0 0.0
    %1405 = vmatprep.subr.mxu0 0.0
    %1406 = vmatpush1.msra.mxu0 0.0
    %1407 = vmatprep.mubr.f32.mxu0 0.0
    %1408 = vmatmul.mubr.f32.gmra.mrb[0].mxu0 %v1128
    %v1409 = vpop.f32.mrb[0].mxu0
    %v1410 = vadd.f32 0.0, %v1409
    %v1411 = vpop.f32.mrb[0].mxu0
    %v1412 = vadd.f32 0.0, %v1411
    %1413 = vdwg.mxu0
    %v1415 = vsel %vm1126, %v1123, 0
    %1417 = vmatprep.subr.mxu0 %v551
    %1418 = vmatpush1.msra.mxu0 %v550
    %1419 = vmatprep.subr.mxu0 0.0
    %1420 = vmatpush1.msra.mxu0 0.0
    %1421 = vmatprep.subr.mxu0 0.0
    %1422 = vmatpush1.msra.mxu0 0.0
    %1423 = vmatprep.subr.mxu0 0.0
    %1424 = vmatpush1.msra.mxu0 0.0
    %1425 = vmatprep.subr.mxu0 0.0
    %1426 = vmatpush1.msra.mxu0 0.0
    %1427 = vmatprep.subr.mxu0 0.0
    %1428 = vmatpush1.msra.mxu0 0.0
    %1429 = vmatprep.subr.mxu0 0.0
    %1430 = vmatpush1.msra.mxu0 0.0
    %1431 = vmatprep.subr.mxu0 0.0
    %1432 = vmatpush1.msra.mxu0 0.0
    %1433 = vmatprep.subr.mxu0 0.0
    %1434 = vmatpush1.msra.mxu0 0.0
    %1435 = vmatprep.subr.mxu0 0.0
    %1436 = vmatpush1.msra.mxu0 0.0
    %1437 = vmatprep.subr.mxu0 0.0
    %1438 = vmatpush1.msra.mxu0 0.0
    %1439 = vmatprep.subr.mxu0 0.0
    %1440 = vmatpush1.msra.mxu0 0.0
    %1441 = vmatprep.subr.mxu0 0.0
    %1442 = vmatpush1.msra.mxu0 0.0
    %1443 = vmatprep.subr.mxu0 0.0
    %1444 = vmatpush1.msra.mxu0 0.0
    %1445 = vmatprep.subr.mxu0 0.0
    %1446 = vmatpush1.msra.mxu0 0.0
    %1447 = vmatprep.subr.mxu0 0.0
    %1448 = vmatpush1.msra.mxu0 0.0
    %1449 = vmatprep.subr.mxu0 0.0
    %1450 = vmatpush1.msra.mxu0 0.0
    %1451 = vmatprep.subr.mxu0 0.0
    %1452 = vmatpush1.msra.mxu0 0.0
    %1453 = vmatprep.subr.mxu0 0.0
    %1454 = vmatpush1.msra.mxu0 0.0
    %1455 = vmatprep.subr.mxu0 0.0
    %1456 = vmatpush1.msra.mxu0 0.0
    %1457 = vmatprep.subr.mxu0 0.0
    %1458 = vmatpush1.msra.mxu0 0.0
    %1459 = vmatprep.subr.mxu0 0.0
    %1460 = vmatpush1.msra.mxu0 0.0
    %1461 = vmatprep.subr.mxu0 0.0
    %1462 = vmatpush1.msra.mxu0 0.0
    %1463 = vmatprep.subr.mxu0 0.0
    %1464 = vmatpush1.msra.mxu0 0.0
    %1465 = vmatprep.subr.mxu0 0.0
    %1466 = vmatpush1.msra.mxu0 0.0
    %1467 = vmatprep.subr.mxu0 0.0
    %1468 = vmatpush1.msra.mxu0 0.0
    %1469 = vmatprep.subr.mxu0 0.0
    %1470 = vmatpush1.msra.mxu0 0.0
    %1471 = vmatprep.subr.mxu0 0.0
    %1472 = vmatpush1.msra.mxu0 0.0
    %1473 = vmatprep.subr.mxu0 0.0
    %1474 = vmatpush1.msra.mxu0 0.0
    %1475 = vmatprep.subr.mxu0 0.0
    %1476 = vmatpush1.msra.mxu0 0.0
    %1477 = vmatprep.subr.mxu0 0.0
    %1478 = vmatpush1.msra.mxu0 0.0
    %1479 = vmatprep.subr.mxu0 0.0
    %1480 = vmatpush1.msra.mxu0 0.0
    %1481 = vmatprep.mubr.f32.mxu0 0.0
    %1482 = vmatmul.mubr.f32.gmra.mrb[0].mxu0 %v1415
    %v1483 = vpop.f32.mrb[0].mxu0
    %v1484 = vadd.f32 0.0, %v1483
    %v1485 = vpop.f32.mrb[0].mxu0
    %v1486 = vadd.f32 0.0, %v1485
    %1487 = vdwg.mxu0
    %1488 = vmatprep.subr.mxu0 %v553
    %1489 = vmatpush1.msra.mxu0 %v552
    %1490 = vmatprep.subr.mxu0 0.0
    %1491 = vmatpush1.msra.mxu0 0.0
    %1492 = vmatprep.subr.mxu0 0.0
    %1493 = vmatpush1.msra.mxu0 0.0
    %1494 = vmatprep.subr.mxu0 0.0
    %1495 = vmatpush1.msra.mxu0 0.0
    %1496 = vmatprep.subr.mxu0 0.0
    %1497 = vmatpush1.msra.mxu0 0.0
    %1498 = vmatprep.subr.mxu0 0.0
    %1499 = vmatpush1.msra.mxu0 0.0
    %1500 = vmatprep.subr.mxu0 0.0
    %1501 = vmatpush1.msra.mxu0 0.0
    %1502 = vmatprep.subr.mxu0 0.0
    %1503 = vmatpush1.msra.mxu0 0.0
    %1504 = vmatprep.subr.mxu0 0.0
    %1505 = vmatpush1.msra.mxu0 0.0
    %1506 = vmatprep.subr.mxu0 0.0
    %1507 = vmatpush1.msra.mxu0 0.0
    %1508 = vmatprep.subr.mxu0 0.0
    %1509 = vmatpush1.msra.mxu0 0.0
    %1510 = vmatprep.subr.mxu0 0.0
    %1511 = vmatpush1.msra.mxu0 0.0
    %1512 = vmatprep.subr.mxu0 0.0
    %1513 = vmatpush1.msra.mxu0 0.0
    %1514 = vmatprep.subr.mxu0 0.0
    %1515 = vmatpush1.msra.mxu0 0.0
    %1516 = vmatprep.subr.mxu0 0.0
    %1517 = vmatpush1.msra.mxu0 0.0
    %1518 = vmatprep.subr.mxu0 0.0
    %1519 = vmatpush1.msra.mxu0 0.0
    %1520 = vmatprep.subr.mxu0 0.0
    %1521 = vmatpush1.msra.mxu0 0.0
    %1522 = vmatprep.subr.mxu0 0.0
    %1523 = vmatpush1.msra.mxu0 0.0
    %1524 = vmatprep.subr.mxu0 0.0
    %1525 = vmatpush1.msra.mxu0 0.0
    %1526 = vmatprep.subr.mxu0 0.0
    %1527 = vmatpush1.msra.mxu0 0.0
    %1528 = vmatprep.subr.mxu0 0.0
    %1529 = vmatpush1.msra.mxu0 0.0
    %1530 = vmatprep.subr.mxu0 0.0
    %1531 = vmatpush1.msra.mxu0 0.0
    %1532 = vmatprep.subr.mxu0 0.0
    %1533 = vmatpush1.msra.mxu0 0.0
    %1534 = vmatprep.subr.mxu0 0.0
    %1535 = vmatpush1.msra.mxu0 0.0
    %1536 = vmatprep.subr.mxu0 0.0
    %1537 = vmatpush1.msra.mxu0 0.0
    %1538 = vmatprep.subr.mxu0 0.0
    %1539 = vmatpush1.msra.mxu0 0.0
    %1540 = vmatprep.subr.mxu0 0.0
    %1541 = vmatpush1.msra.mxu0 0.0
    %1542 = vmatprep.subr.mxu0 0.0
    %1543 = vmatpush1.msra.mxu0 0.0
    %1544 = vmatprep.subr.mxu0 0.0
    %1545 = vmatpush1.msra.mxu0 0.0
    %1546 = vmatprep.subr.mxu0 0.0
    %1547 = vmatpush1.msra.mxu0 0.0
    %1548 = vmatprep.subr.mxu0 0.0
    %1549 = vmatpush1.msra.mxu0 0.0
    %1550 = vmatprep.subr.mxu0 0.0
    %1551 = vmatpush1.msra.mxu0 0.0
    %1552 = vmatprep.mubr.f32.mxu0 0.0
    %1553 = vmatmul.mubr.f32.gmra.mrb[0].mxu0 %v1415
    %v1554 = vpop.f32.mrb[0].mxu0
    %v1555 = vadd.f32 0.0, %v1554
    %v1556 = vpop.f32.mrb[0].mxu0
    %v1557 = vadd.f32 0.0, %v1556
    %1558 = vdwg.mxu0
    %1559 = vmatprep.subr.mxu0 %v555
    %1560 = vmatpush1.msra.mxu0 %v554
    %1561 = vmatprep.subr.mxu0 0.0
    %1562 = vmatpush1.msra.mxu0 0.0
    %1563 = vmatprep.subr.mxu0 0.0
    %1564 = vmatpush1.msra.mxu0 0.0
    %1565 = vmatprep.subr.mxu0 0.0
    %1566 = vmatpush1.msra.mxu0 0.0
    %1567 = vmatprep.subr.mxu0 0.0
    %1568 = vmatpush1.msra.mxu0 0.0
    %1569 = vmatprep.subr.mxu0 0.0
    %1570 = vmatpush1.msra.mxu0 0.0
    %1571 = vmatprep.subr.mxu0 0.0
    %1572 = vmatpush1.msra.mxu0 0.0
    %1573 = vmatprep.subr.mxu0 0.0
    %1574 = vmatpush1.msra.mxu0 0.0
    %1575 = vmatprep.subr.mxu0 0.0
    %1576 = vmatpush1.msra.mxu0 0.0
    %1577 = vmatprep.subr.mxu0 0.0
    %1578 = vmatpush1.msra.mxu0 0.0
    %1579 = vmatprep.subr.mxu0 0.0
    %1580 = vmatpush1.msra.mxu0 0.0
    %1581 = vmatprep.subr.mxu0 0.0
    %1582 = vmatpush1.msra.mxu0 0.0
    %1583 = vmatprep.subr.mxu0 0.0
    %1584 = vmatpush1.msra.mxu0 0.0
    %1585 = vmatprep.subr.mxu0 0.0
    %1586 = vmatpush1.msra.mxu0 0.0
    %1587 = vmatprep.subr.mxu0 0.0
    %1588 = vmatpush1.msra.mxu0 0.0
    %1589 = vmatprep.subr.mxu0 0.0
    %1590 = vmatpush1.msra.mxu0 0.0
    %1591 = vmatprep.subr.mxu0 0.0
    %1592 = vmatpush1.msra.mxu0 0.0
    %1593 = vmatprep.subr.mxu0 0.0
    %1594 = vmatpush1.msra.mxu0 0.0
    %1595 = vmatprep.subr.mxu0 0.0
    %1596 = vmatpush1.msra.mxu0 0.0
    %1597 = vmatprep.subr.mxu0 0.0
    %1598 = vmatpush1.msra.mxu0 0.0
    %1599 = vmatprep.subr.mxu0 0.0
    %1600 = vmatpush1.msra.mxu0 0.0
    %1601 = vmatprep.subr.mxu0 0.0
    %1602 = vmatpush1.msra.mxu0 0.0
    %1603 = vmatprep.subr.mxu0 0.0
    %1604 = vmatpush1.msra.mxu0 0.0
    %1605 = vmatprep.subr.mxu0 0.0
    %1606 = vmatpush1.msra.mxu0 0.0
    %1607 = vmatprep.subr.mxu0 0.0
    %1608 = vmatpush1.msra.mxu0 0.0
    %1609 = vmatprep.subr.mxu0 0.0
    %1610 = vmatpush1.msra.mxu0 0.0
    %1611 = vmatprep.subr.mxu0 0.0
    %1612 = vmatpush1.msra.mxu0 0.0
    %1613 = vmatprep.subr.mxu0 0.0
    %1614 = vmatpush1.msra.mxu0 0.0
    %1615 = vmatprep.subr.mxu0 0.0
    %1616 = vmatpush1.msra.mxu0 0.0
    %1617 = vmatprep.subr.mxu0 0.0
    %1618 = vmatpush1.msra.mxu0 0.0
    %1619 = vmatprep.subr.mxu0 0.0
    %1620 = vmatpush1.msra.mxu0 0.0
    %1621 = vmatprep.subr.mxu0 0.0
    %1622 = vmatpush1.msra.mxu0 0.0
    %1623 = vmatprep.mubr.f32.mxu0 0.0
    %1624 = vmatmul.mubr.f32.gmra.mrb[0].mxu0 %v1415
    %v1625 = vpop.f32.mrb[0].mxu0
    %v1626 = vadd.f32 0.0, %v1625
    %v1627 = vpop.f32.mrb[0].mxu0
    %v1628 = vadd.f32 0.0, %v1627
    %1629 = vdwg.mxu0
    %1630 = vmatprep.subr.mxu0 %v557
    %1631 = vmatpush1.msra.mxu0 %v556
    %1632 = vmatprep.subr.mxu0 0.0
    %1633 = vmatpush1.msra.mxu0 0.0
    %1634 = vmatprep.subr.mxu0 0.0
    %1635 = vmatpush1.msra.mxu0 0.0
    %1636 = vmatprep.subr.mxu0 0.0
    %1637 = vmatpush1.msra.mxu0 0.0
    %1638 = vmatprep.subr.mxu0 0.0
    %1639 = vmatpush1.msra.mxu0 0.0
    %1640 = vmatprep.subr.mxu0 0.0
    %1641 = vmatpush1.msra.mxu0 0.0
    %1642 = vmatprep.subr.mxu0 0.0
    %1643 = vmatpush1.msra.mxu0 0.0
    %1644 = vmatprep.subr.mxu0 0.0
    %1645 = vmatpush1.msra.mxu0 0.0
    %1646 = vmatprep.subr.mxu0 0.0
    %1647 = vmatpush1.msra.mxu0 0.0
    %1648 = vmatprep.subr.mxu0 0.0
    %1649 = vmatpush1.msra.mxu0 0.0
    %1650 = vmatprep.subr.mxu0 0.0
    %1651 = vmatpush1.msra.mxu0 0.0
    %1652 = vmatprep.subr.mxu0 0.0
    %1653 = vmatpush1.msra.mxu0 0.0
    %1654 = vmatprep.subr.mxu0 0.0
    %1655 = vmatpush1.msra.mxu0 0.0
    %1656 = vmatprep.subr.mxu0 0.0
    %1657 = vmatpush1.msra.mxu0 0.0
    %1658 = vmatprep.subr.mxu0 0.0
    %1659 = vmatpush1.msra.mxu0 0.0
    %1660 = vmatprep.subr.mxu0 0.0
    %1661 = vmatpush1.msra.mxu0 0.0
    %1662 = vmatprep.subr.mxu0 0.0
    %1663 = vmatpush1.msra.mxu0 0.0
    %1664 = vmatprep.subr.mxu0 0.0
    %1665 = vmatpush1.msra.mxu0 0.0
    %1666 = vmatprep.subr.mxu0 0.0
    %1667 = vmatpush1.msra.mxu0 0.0
    %1668 = vmatprep.subr.mxu0 0.0
    %1669 = vmatpush1.msra.mxu0 0.0
    %1670 = vmatprep.subr.mxu0 0.0
    %1671 = vmatpush1.msra.mxu0 0.0
    %1672 = vmatprep.subr.mxu0 0.0
    %1673 = vmatpush1.msra.mxu0 0.0
    %1674 = vmatprep.subr.mxu0 0.0
    %1675 = vmatpush1.msra.mxu0 0.0
    %1676 = vmatprep.subr.mxu0 0.0
    %1677 = vmatpush1.msra.mxu0 0.0
    %1678 = vmatprep.subr.mxu0 0.0
    %1679 = vmatpush1.msra.mxu0 0.0
    %1680 = vmatprep.subr.mxu0 0.0
    %1681 = vmatpush1.msra.mxu0 0.0
    %1682 = vmatprep.subr.mxu0 0.0
    %1683 = vmatpush1.msra.mxu0 0.0
    %1684 = vmatprep.subr.mxu0 0.0
    %1685 = vmatpush1.msra.mxu0 0.0
    %1686 = vmatprep.subr.mxu0 0.0
    %1687 = vmatpush1.msra.mxu0 0.0
    %1688 = vmatprep.subr.mxu0 0.0
    %1689 = vmatpush1.msra.mxu0 0.0
    %1690 = vmatprep.subr.mxu0 0.0
    %1691 = vmatpush1.msra.mxu0 0.0
    %1692 = vmatprep.subr.mxu0 0.0
    %1693 = vmatpush1.msra.mxu0 0.0
    %1694 = vmatprep.mubr.f32.mxu0 0.0
    %1695 = vmatmul.mubr.f32.gmra.mrb[0].mxu0 %v1415
    %v1696 = vpop.f32.mrb[0].mxu0
    %v1697 = vadd.f32 0.0, %v1696
    %v1698 = vpop.f32.mrb[0].mxu0
    %v1699 = vadd.f32 0.0, %v1698
    %1700 = vdwg.mxu0
    %v1701 = vmul.f32 %v1197, %v1197
    %v1702 = vmul.f32 %v1199, %v1199
    %v1703 = vmul.f32 %v1268, %v1268
    %v1704 = vmul.f32 %v1270, %v1270
    %v1705 = vmul.f32 %v1339, %v1339
    %v1706 = vmul.f32 %v1341, %v1341
    %v1707 = vmul.f32 %v1410, %v1410
    %v1708 = vmul.f32 %v1412, %v1412
    %v1709 = vsub.f32 %v1484, %v1701
    %v1710 = vsub.f32 %v1486, %v1702
    %v1711 = vsub.f32 %v1555, %v1703
    %v1712 = vsub.f32 %v1557, %v1704
    %v1713 = vsub.f32 %v1626, %v1705
    %v1714 = vsub.f32 %v1628, %v1706
    %v1715 = vsub.f32 %v1697, %v1707
    %v1716 = vsub.f32 %v1699, %v1708
    %v1717 = vadd.f32 %v1709, 1e-09
    %v1718 = vadd.f32 %v1710, 1e-09
    %v1719 = vadd.f32 %v1711, 1e-09
    %v1720 = vadd.f32 %v1712, 1e-09
    %v1721 = vadd.f32 %v1713, 1e-09
    %v1722 = vadd.f32 %v1714, 1e-09
    %v1723 = vadd.f32 %v1715, 1e-09
    %v1724 = vadd.f32 %v1716, 1e-09
    %v1725 = vrsqrt.pop %v1717
    %v1726 = vrsqrt.pop %v1718
    %v1727 = vrsqrt.pop %v1719
    %v1728 = vrsqrt.pop %v1720
    %v1729 = vrsqrt.pop %v1721
    %v1730 = vrsqrt.pop %v1722
    %v1731 = vrsqrt.pop %v1723
    %v1732 = vrsqrt.pop %v1724
    %v1733 = vsub.f32 %v205, %v1197
    %v1734 = vsub.f32 %v207, %v1199
    %v1735 = vsub.f32 %v276, %v1268
    %v1736 = vsub.f32 %v278, %v1270
    %v1737 = vsub.f32 %v347, %v1339
    %v1738 = vsub.f32 %v349, %v1341
    %v1739 = vsub.f32 %v418, %v1410
    %v1740 = vsub.f32 %v420, %v1412
    %v1741 = vmul.f32 %v1733, %v1725
    %v1742 = vmul.f32 %v1734, %v1726
    %v1743 = vmul.f32 %v1735, %v1727
    %v1744 = vmul.f32 %v1736, %v1728
    %v1745 = vmul.f32 %v1737, %v1729
    %v1746 = vmul.f32 %v1738, %v1730
    %v1747 = vmul.f32 %v1739, %v1731
    %v1748 = vmul.f32 %v1740, %v1732
    %v1749 = vlaneseq
    %v1750 = vshrl.u32 %v1749, 7
    %v1751 = vsub.s32 1, %v1750
    %v1752 = vrot.slane %v22, %v1751
    %v1753 = vlaneseq
    %v1754 = vshrl.u32 %v1753, 7
    %v1755 = vsub.s32 5, %v1754
    %v1756 = vrot.slane %v22, %v1755
    %v1757 = vlaneseq
    %v1758 = vshrl.u32 %v1757, 7
    %v1759 = vsub.s32 1, %v1758
    %v1760 = vrot.slane %v23, %v1759
    %v1761 = vlaneseq
    %v1762 = vshrl.u32 %v1761, 7
    %v1763 = vsub.s32 5, %v1762
    %v1764 = vrot.slane %v23, %v1763
    %v1765 = vlaneseq
    %v1766 = vshrl.u32 %v1765, 7
    %v1767 = vsub.s32 1, %v1766
    %v1768 = vrot.slane %v24, %v1767
    %v1769 = vlaneseq
    %v1770 = vshrl.u32 %v1769, 7
    %v1771 = vsub.s32 5, %v1770
    %v1772 = vrot.slane %v24, %v1771
    %v1773 = vlaneseq
    %v1774 = vshrl.u32 %v1773, 7
    %v1775 = vsub.s32 1, %v1774
    %v1776 = vrot.slane %v25, %v1775
    %v1777 = vlaneseq
    %v1778 = vshrl.u32 %v1777, 7
    %v1779 = vsub.s32 5, %v1778
    %v1780 = vrot.slane %v25, %v1779
    %v1789 = vlaneseq
    %v1790 = vshrl.u32 %v1789, 7
    %v1791 = vsub.s32 1, %v1790
    %v1792 = vrot.slane %v1752, %v1791
    %v1793 = vlaneseq
    %v1794 = vshrl.u32 %v1793, 7
    %v1795 = vsub.s32 1, %v1794
    %v1796 = vrot.slane %v1756, %v1795
    %v1797 = vlaneseq
    %v1798 = vshrl.u32 %v1797, 7
    %v1799 = vsub.s32 1, %v1798
    %v1800 = vrot.slane %v1760, %v1799
    %v1801 = vlaneseq
    %v1802 = vshrl.u32 %v1801, 7
    %v1803 = vsub.s32 1, %v1802
    %v1804 = vrot.slane %v1764, %v1803
    %v1805 = vlaneseq
    %v1806 = vshrl.u32 %v1805, 7
    %v1807 = vsub.s32 1, %v1806
    %v1808 = vrot.slane %v1768, %v1807
    %v1809 = vlaneseq
    %v1810 = vshrl.u32 %v1809, 7
    %v1811 = vsub.s32 1, %v1810
    %v1812 = vrot.slane %v1772, %v1811
    %v1813 = vlaneseq
    %v1814 = vshrl.u32 %v1813, 7
    %v1815 = vsub.s32 1, %v1814
    %v1816 = vrot.slane %v1776, %v1815
    %v1817 = vlaneseq
    %v1818 = vshrl.u32 %v1817, 7
    %v1819 = vsub.s32 1, %v1818
    %v1820 = vrot.slane %v1780, %v1819
    %v1821 = vmul.f32 %v1741, %v1792
    %v1822 = vmul.f32 %v1742, %v1796
    %v1823 = vmul.f32 %v1743, %v1800
    %v1824 = vmul.f32 %v1744, %v1804
    %v1825 = vmul.f32 %v1745, %v1808
    %v1826 = vmul.f32 %v1746, %v1812
    %v1827 = vmul.f32 %v1747, %v1816
    %v1828 = vmul.f32 %v1748, %v1820
    %v1829 = vlaneseq
    %v1830 = vshrl.u32 %v1829, 7
    %v1831 = vsub.s32 2, %v1830
    %v1832 = vrot.slane %v22, %v1831
    %v1833 = vlaneseq
    %v1834 = vshrl.u32 %v1833, 7
    %v1835 = vsub.s32 6, %v1834
    %v1836 = vrot.slane %v22, %v1835
    %v1837 = vlaneseq
    %v1838 = vshrl.u32 %v1837, 7
    %v1839 = vsub.s32 2, %v1838
    %v1840 = vrot.slane %v23, %v1839
    %v1841 = vlaneseq
    %v1842 = vshrl.u32 %v1841, 7
    %v1843 = vsub.s32 6, %v1842
    %v1844 = vrot.slane %v23, %v1843
    %v1845 = vlaneseq
    %v1846 = vshrl.u32 %v1845, 7
    %v1847 = vsub.s32 2, %v1846
    %v1848 = vrot.slane %v24, %v1847
    %v1849 = vlaneseq
    %v1850 = vshrl.u32 %v1849, 7
    %v1851 = vsub.s32 6, %v1850
    %v1852 = vrot.slane %v24, %v1851
    %v1853 = vlaneseq
    %v1854 = vshrl.u32 %v1853, 7
    %v1855 = vsub.s32 2, %v1854
    %v1856 = vrot.slane %v25, %v1855
    %v1857 = vlaneseq
    %v1858 = vshrl.u32 %v1857, 7
    %v1859 = vsub.s32 6, %v1858
    %v1860 = vrot.slane %v25, %v1859
    %v1869 = vlaneseq
    %v1870 = vshrl.u32 %v1869, 7
    %v1871 = vsub.s32 2, %v1870
    %v1872 = vrot.slane %v1832, %v1871
    %v1873 = vlaneseq
    %v1874 = vshrl.u32 %v1873, 7
    %v1875 = vsub.s32 2, %v1874
    %v1876 = vrot.slane %v1836, %v1875
    %v1877 = vlaneseq
    %v1878 = vshrl.u32 %v1877, 7
    %v1879 = vsub.s32 2, %v1878
    %v1880 = vrot.slane %v1840, %v1879
    %v1881 = vlaneseq
    %v1882 = vshrl.u32 %v1881, 7
    %v1883 = vsub.s32 2, %v1882
    %v1884 = vrot.slane %v1844, %v1883
    %v1885 = vlaneseq
    %v1886 = vshrl.u32 %v1885, 7
    %v1887 = vsub.s32 2, %v1886
    %v1888 = vrot.slane %v1848, %v1887
    %v1889 = vlaneseq
    %v1890 = vshrl.u32 %v1889, 7
    %v1891 = vsub.s32 2, %v1890
    %v1892 = vrot.slane %v1852, %v1891
    %v1893 = vlaneseq
    %v1894 = vshrl.u32 %v1893, 7
    %v1895 = vsub.s32 2, %v1894
    %v1896 = vrot.slane %v1856, %v1895
    %v1897 = vlaneseq
    %v1898 = vshrl.u32 %v1897, 7
    %v1899 = vsub.s32 2, %v1898
    %v1900 = vrot.slane %v1860, %v1899
    %v1901 = vadd.f32 %v1821, %v1872
    %v1902 = vadd.f32 %v1822, %v1876
    %v1903 = vadd.f32 %v1823, %v1880
    %v1904 = vadd.f32 %v1824, %v1884
    %v1905 = vadd.f32 %v1825, %v1888
    %v1906 = vadd.f32 %v1826, %v1892
    %v1907 = vadd.f32 %v1827, %v1896
    %v1908 = vadd.f32 %v1828, %v1900
    %v1917 = vcombine.low %v1901, %v1902
    %v1918 = vcombine.low %v1903, %v1904
    %v1920 = vunpack.c.l.s4 1983009808
    %v1921 = vunpack.c.0.s8 %v1920
    %v1922 = vlaneseq
    %v1923 = vshrl.u32 %v1922, 7
    %v1924 = vsub.s32 %v1921, %v1923
    %v1925 = vrot.slane %v1917, %v1924
    %v1927 = vunpack.c.l.s4 1983009808
    %v1928 = vunpack.c.0.s8 %v1927
    %v1929 = vlaneseq
    %v1930 = vshrl.u32 %v1929, 7
    %v1931 = vsub.s32 %v1928, %v1930
    %v1932 = vrot.slane %v1918, %v1931
    %v1933 = vcombine.low %v1925, %v1932
    %v1934 = vcombine.low %v1905, %v1906
    %v1935 = vcombine.low %v1907, %v1908
    %v1937 = vunpack.c.l.s4 1983009808
    %v1938 = vunpack.c.0.s8 %v1937
    %v1939 = vlaneseq
    %v1940 = vshrl.u32 %v1939, 7
    %v1941 = vsub.s32 %v1938, %v1940
    %v1942 = vrot.slane %v1934, %v1941
    %v1944 = vunpack.c.l.s4 1983009808
    %v1945 = vunpack.c.0.s8 %v1944
    %v1946 = vlaneseq
    %v1947 = vshrl.u32 %v1946, 7
    %v1948 = vsub.s32 %v1945, %v1947
    %v1949 = vrot.slane %v1935, %v1948
    %v1950 = vcombine.low %v1942, %v1949
    %1953 = vst [vmem:[#allocation2] sm:$0xff] %v1933
    %1954 = vst [vmem:[#allocation2 + $0x8] sm:$0xff] %v1950
    // Predicated region
    $region22: #{tpu_custom_call.1} parent=1 // pred_check
      _
    $region23: #{tpu_custom_call.1} parent=1 // pred_check_branch
      %1956 = sbr.rel (0) target = $region25
    $region24: #{tpu_custom_call.1} parent=1 // pred_region
      %s1958 = ssub.s32 256, 256
      %1959 = vsyncadd [#allocation3], %s1958
      %s1961 = sshll.u32 [#allocation2], 4
      %s1962 = int_to_ptr.vmem [resolvable:$true] %s1961
      %1964 = dma.vmem_to_hbm [thread:$0]  %s1962, 256, %s5, [#allocation3]
    $region25: #{tpu_custom_call.1} parent=1 // pred_fallthru
      _
    // Predicated region
    $region26: #{tpu_custom_call.1} parent=1 // pred_check
      _
    $region27: #{tpu_custom_call.1} parent=1 // pred_check_branch
      %1966 = sbr.rel (0) target = $region29
    $region28: #{tpu_custom_call.1} parent=1 // pred_region
      %1967 = dma.done [#allocation3], 256
    $region29: #{tpu_custom_call.1} parent=1 // pred_fallthru
      _
    %1968 = vsyncpa [#allocation3], 1

</llo_original>
